<compile_context>
chip_gen: v7x
topology: tpu7x:2x2x1
jax: 0.10.0
libtpu: 0.0.40
codegen_flags: <defaults>
</compile_context>

<pallas_src>
import numpy as np
import jax
import jax.numpy as jnp
from jax.experimental import pallas as pl
from jax.experimental.pallas import tpu as pltpu

LRELU_SLOPE = 0.2   # 'lrelu' activation (GAN-standard negative slope)
BN_EPS = 1e-5       # PyTorch BatchNorm2d default eps


# ---------------------------------------------------------------------------
# Fused kernel: all conv+BN+LReLU layers in one invocation; activations stay
# in VMEM/vregs as a single lane-dense (ROWS, 128) f32 slab the whole time.
# ---------------------------------------------------------------------------
def make_fused_cnn_kernel(taps, rows_in, s_offsets, rows):
    def kernel(a_ref, s_ref, m_ref, bn_ref, o_ref):
        a = a_ref[...]                                   # (rows_in[0], 128) f32
        for l, k in enumerate(taps):
            rin = rows_in[l]
            a16 = a.astype(jnp.bfloat16)                 # bf16 MXU operand
            # ---- Conv: per-tap column selection B_j = A @ S_j (0/1 matrix,
            # lossless), stacked, then ONE M_big contraction (K = k*rin).
            bs = [jnp.dot(a16, s_ref[s_offsets[l] + j],
                          preferred_element_type=jnp.float32)
                  for j in range(k)]
            b = bs[0] if k == 1 else jnp.concatenate(bs, axis=0)  # (k*rin, 128)
            m = m_ref[l][:, :k * rin]                             # (rows, k*rin) bf16
            x = jnp.dot(m, b.astype(jnp.bfloat16),
                        preferred_element_type=jnp.float32)       # (rows, 128) f32
            # ---- BatchNorm2d (training-mode batch stats): reduce along lanes
            # first (XLU), then per-channel average via two tiny matvecs.
            rs1 = jnp.sum(x, axis=1, keepdims=True)               # (rows, 1)
            rs2 = jnp.sum(x * x, axis=1, keepdims=True)           # (rows, 1)
            p = bn_ref[l][:, :rows]                               # (rows, rows) f32
            mean = jnp.dot(p, rs1, preferred_element_type=jnp.float32)
            ex2 = jnp.dot(p, rs2, preferred_element_type=jnp.float32)
            var = jnp.maximum(ex2 - mean * mean, 0.0)             # biased variance
            inv = jax.lax.rsqrt(var + BN_EPS)                     # EUP
            g = bn_ref[l][:, rows:rows + 1]                       # (rows, 1) gamma
            bshift = bn_ref[l][:, rows + 1:rows + 2]              # (rows, 1) beta
            scale = inv * g
            shift = bshift - mean * scale
            y = x * scale + shift
            # ---- LeakyReLU(0.2)
            a = jnp.where(y > 0.0, y, LRELU_SLOPE * y)
        o_ref[...] = a                                            # (rows, 128), lane-dense
    return kernel


# ---------------------------------------------------------------------------
# Parameters (deterministic synthetic init, mirrors init_weights / DCGAN style)
# ---------------------------------------------------------------------------
def init_cnn_params(key, in_dim=1, out_dims=(4, 8, 16), kernel_size=3):
    layers = []
    in_dims = [in_dim] + list(out_dims[:-1])
    for ci, co in zip(in_dims, out_dims):
        key, kw, kg = jax.random.split(key, 3)
        layers.append(dict(
            w=0.02 * jax.random.normal(kw, (co, ci, kernel_size, kernel_size), jnp.float32),
            gamma=1.0 + 0.02 * jax.random.normal(kg, (co,), jnp.float32),
            beta=jnp.zeros((co,), jnp.float32),
            k=kernel_size, stride=2, pad=1,
        ))
    # final Conv2d(out_dims[-1] -> 1, k_size=1)
    key, kw, kg = jax.random.split(key, 3)
    layers.append(dict(
        w=0.02 * jax.random.normal(kw, (1, out_dims[-1], 1, 1), jnp.float32),
        gamma=1.0 + 0.02 * jax.random.normal(kg, (1,), jnp.float32),
        beta=jnp.zeros((1,), jnp.float32),
        k=1, stride=1, pad=0,
    ))
    return layers


# ---------------------------------------------------------------------------
# One-time (init) host precompute of the constant operator matrices.
# Layout: rows = (channel, height), lanes = (batch, width-block of BS cols).
#   conv_l(A) = M_big @ vstack_j(A @ S_j)
# Padding rows (beyond valid co*ho) have zero M/P/gamma/beta rows so they stay
# exactly 0 through BN+LReLU (invariant required for correctness).
# ---------------------------------------------------------------------------
def pack_operators(layers, batch, in_dim, h, w):
    n_layers = len(layers)

    geoms = []
    c_in, h_in, w_in = in_dim, h, w
    for lyr in layers:
        k, s, p = lyr["k"], lyr["stride"], lyr["pad"]
        c_out = lyr["w"].shape[0]
        h_out = (h_in + 2 * p - k) // s + 1
        w_out = (w_in + 2 * p - k) // s + 1
        geoms.append((c_in, h_in, w_in, c_out, h_out, w_out, k, s, p))
        c_in, h_in, w_in = c_out, h_out, w_out

    BS = w                                  # lane columns reserved per sample
    LANES = batch * BS                      # 8 * 16 = 128 -> lane-dense
    ROWS = max(co * ho for (_, _, _, co, ho, _, _, _, _) in geoms)
    ROWS = -(-ROWS // 8) * 8                # sublane multiple
    rows_in = [in_dim * h] + [ROWS] * (n_layers - 1)   # layer-0 M uses real row count
    taps = tuple(g[6] for g in geoms)
    s_offsets = tuple(int(v) for v in np.cumsum([0] + list(taps))[:-1])
    n_taps_total = int(sum(taps))           # zero-padded taps dropped
    MCOLS = max(k * r for k, r in zip(taps, rows_in))

    S_all = np.zeros((n_taps_total, LANES, LANES), np.float32)   # 0/1 column selection
    M_all = np.zeros((n_layers, ROWS, MCOLS), np.float32)        # weights + vertical taps
    PGB = np.zeros((n_layers, ROWS, ROWS + 2), np.float32)       # [P | gamma | beta]

    for li, (lyr, geom) in enumerate(zip(layers, geoms)):
        ci, hi, wi, co, ho, wo, k, s, p = geom
        rin = rows_in[li]
        wgt = np.asarray(lyr["w"], np.float32)
        gamma = np.asarray(lyr["gamma"], np.float32)
        beta = np.asarray(lyr["beta"], np.float32)
        for kj in range(k):
            si = s_offsets[li] + kj
            # Horizontal tap: block-diagonal over batch, zero padding columns.
            for nn in range(batch):
                for wo_ in range(wo):
                    wi_ = s * wo_ + kj - p
                    if 0 <= wi_ < wi:
                        S_all[si, nn * BS + wi_, nn * BS + wo_] = 1.0
            # Weights x vertical taps for this horizontal tap.
            for co_ in range(co):
                for oh in range(ho):
                    r_out = co_ * ho + oh
                    for ki in range(k):
                        ih = s * oh + ki - p
                        if not (0 <= ih < hi):
                            continue            # zero padding row
                        for ci_ in range(ci):
                            r_in = ci_ * hi + ih
                            M_all[li, r_out, kj * rin + r_in] += wgt[co_, ci_, ki, kj]
        cnt = batch * ho * wo
        for co_ in range(co):
            rows_c = [co_ * ho + oh for oh in range(ho)]
            for r in rows_c:
                PGB[li, r, ROWS] = gamma[co_]
                PGB[li, r, ROWS + 1] = beta[co_]
                for rp in rows_c:
                    PGB[li, r, rp] = 1.0 / cnt

    co, ho, wo = geoms[-1][3], geoms[-1][4], geoms[-1][5]
    return dict(
        S=jnp.asarray(S_all, jnp.bfloat16),     # matmul operands -> bf16
        M=jnp.asarray(M_all, jnp.bfloat16),
        BN=jnp.asarray(PGB, jnp.float32),       # averaging/affine stay f32
        taps=taps, rows_in=tuple(rows_in), s_offsets=s_offsets,
        ROWS=ROWS, LANES=LANES, BS=BS,
        out_shape=(batch, co, ho, wo))


# ---------------------------------------------------------------------------
# Full forward: one grid-less pallas_call (pool is None since last_dim=None).
# ---------------------------------------------------------------------------
def cnn_forward(x, ops):
    n, c, h, w = x.shape
    # Lane-dense input slab: rows = (channel, height), lanes = (batch, width).
    a0 = x.transpose(1, 2, 0, 3).reshape(c * h, n * w)

    out = pl.pallas_call(
        make_fused_cnn_kernel(ops["taps"], ops["rows_in"],
                              ops["s_offsets"], ops["ROWS"]),
        out_shape=jax.ShapeDtypeStruct((ops["ROWS"], ops["LANES"]), jnp.float32),
        in_specs=[pl.BlockSpec(memory_space=pltpu.MemorySpace.VMEM)] * 4,
        out_specs=pl.BlockSpec(memory_space=pltpu.MemorySpace.VMEM),
    )(a0, ops["S"], ops["M"], ops["BN"])

    nb, co, ho, wo = ops["out_shape"]
    y = out[:co * ho, :].reshape(co, ho, nb, ops["BS"])[:, :, :, :wo]
    return y.transpose(2, 0, 1, 3)              # back to NCHW


# ---------------------------------------------------------------------------
# Pure-JAX f32 reference (conv + training-mode BN + LeakyReLU) for validation.
# ---------------------------------------------------------------------------
def cnn_reference(x, layers):
    for lyr in layers:
        w, s, p = lyr["w"], lyr["stride"], lyr["pad"]
        y = jax.lax.conv_general_dilated(
            x, w, window_strides=(s, s), padding=((p, p), (p, p)),
            dimension_numbers=("NCHW", "OIHW", "NCHW"),
            precision=jax.lax.Precision.HIGHEST)
        mean = jnp.mean(y, axis=(0, 2, 3), keepdims=True)
        var = jnp.mean((y - mean) ** 2, axis=(0, 2, 3), keepdims=True)
        g = lyr["gamma"].reshape(1, -1, 1, 1)
        b = lyr["beta"].reshape(1, -1, 1, 1)
        y = (y - mean) * jax.lax.rsqrt(var + BN_EPS) * g + b
        x = jnp.where(y > 0.0, y, LRELU_SLOPE * y)
    return x


if __name__ == "__main__":
    key = jax.random.PRNGKey(0)
    kx, kp = jax.random.split(key)

    # CNN(in_dim=1, out_dims=[4, 8, 16], kernel_size=3, last_dim=None)
    # batch=8 so (batch * width) fills the 128-lane axis exactly.
    x = jax.random.normal(kx, (8, 1, 16, 16), jnp.float32)        # NCHW
    layers = init_cnn_params(kp, in_dim=1, out_dims=(4, 8, 16), kernel_size=3)
    ops = pack_operators(layers, batch=8, in_dim=1, h=16, w=16)   # once, at init

    y = cnn_forward(x, ops)
    jax.block_until_ready(y)

    y_ref = cnn_reference(x, layers)
    jax.block_until_ready(y_ref)

    # 3 stride-2 blocks: 16 -> 8 -> 4 -> 2, then 1x1 conv to 1 channel
    assert y.shape == (8, 1, 2, 2), y.shape
    assert jnp.all(jnp.isfinite(y))
    # bf16 MXU operands (f32 accumulate) -> per-element atol+rtol tolerance
    assert jnp.allclose(y, y_ref, atol=5e-2, rtol=5e-2), \
        float(jnp.max(jnp.abs(y - y_ref)))
    print("KERNEL_OK")
</pallas_src>

<mosaic_0001>
module attributes {stable_mosaic.version = 11 : i64} {
  func.func @kernel(%arg0: memref<16x128xf32, #tpu.memory_space<vmem>>, %arg1: memref<10x128x128xbf16, #tpu.memory_space<vmem>>, %arg2: memref<4x32x96xbf16, #tpu.memory_space<vmem>>, %arg3: memref<4x32x34xf32, #tpu.memory_space<vmem>>, %arg4: memref<32x128xf32, #tpu.memory_space<vmem>>) attributes {dimension_semantics = [], scalar_prefetch = 0 : i64, scratch_operands = 0 : i64, tpu.core_type = #tpu.core_type<tc>} {
    %c0 = arith.constant 0 : index
    %c0_0 = arith.constant 0 : index
    %0 = vector.load %arg0[%c0, %c0_0] : memref<16x128xf32, #tpu.memory_space<vmem>>, vector<16x128xf32>
    %1 = arith.truncf %0 : vector<16x128xf32> to vector<16x128xbf16>
    %c0_1 = arith.constant 0 : index
    %c0_2 = arith.constant 0 : index
    %c0_3 = arith.constant 0 : index
    %2 = vector.load %arg1[%c0_1, %c0_2, %c0_3] : memref<10x128x128xbf16, #tpu.memory_space<vmem>>, vector<1x128x128xbf16>
    %3 = vector.shape_cast %2 : vector<1x128x128xbf16> to vector<128x128xbf16>
    %cst = arith.constant dense<0.000000e+00> : vector<16x128xf32>
    %4 = tpu.matmul %1, %3, %cst {dimension_numbers = #tpu.dot_dimension_numbers<[1], [0], [0], [1], [0, 0, 1, 1], [], []>} : vector<16x128xbf16>, vector<128x128xbf16>, vector<16x128xf32> -> vector<16x128xf32>
    %c1 = arith.constant 1 : index
    %c0_4 = arith.constant 0 : index
    %c0_5 = arith.constant 0 : index
    %5 = vector.load %arg1[%c1, %c0_4, %c0_5] : memref<10x128x128xbf16, #tpu.memory_space<vmem>>, vector<1x128x128xbf16>
    %6 = vector.shape_cast %5 : vector<1x128x128xbf16> to vector<128x128xbf16>
    %cst_6 = arith.constant dense<0.000000e+00> : vector<16x128xf32>
    %7 = tpu.matmul %1, %6, %cst_6 {dimension_numbers = #tpu.dot_dimension_numbers<[1], [0], [0], [1], [0, 0, 1, 1], [], []>} : vector<16x128xbf16>, vector<128x128xbf16>, vector<16x128xf32> -> vector<16x128xf32>
    %c2 = arith.constant 2 : index
    %c0_7 = arith.constant 0 : index
    %c0_8 = arith.constant 0 : index
    %8 = vector.load %arg1[%c2, %c0_7, %c0_8] : memref<10x128x128xbf16, #tpu.memory_space<vmem>>, vector<1x128x128xbf16>
    %9 = vector.shape_cast %8 : vector<1x128x128xbf16> to vector<128x128xbf16>
    %cst_9 = arith.constant dense<0.000000e+00> : vector<16x128xf32>
    %10 = tpu.matmul %1, %9, %cst_9 {dimension_numbers = #tpu.dot_dimension_numbers<[1], [0], [0], [1], [0, 0, 1, 1], [], []>} : vector<16x128xbf16>, vector<128x128xbf16>, vector<16x128xf32> -> vector<16x128xf32>
    %11 = tpu.concatenate %4, %7, %10 in 0 : vector<16x128xf32>, vector<16x128xf32>, vector<16x128xf32> -> vector<48x128xf32>
    %c0_10 = arith.constant 0 : index
    %c0_11 = arith.constant 0 : index
    %c0_12 = arith.constant 0 : index
    %12 = vector.load %arg2[%c0_10, %c0_11, %c0_12] : memref<4x32x96xbf16, #tpu.memory_space<vmem>>, vector<1x32x96xbf16>
    %13 = vector.shape_cast %12 : vector<1x32x96xbf16> to vector<32x96xbf16>
    %14 = vector.extract_strided_slice %13 {offsets = [0, 0], sizes = [32, 48], strides = [1, 1]} : vector<32x96xbf16> to vector<32x48xbf16>
    %15 = arith.truncf %11 : vector<48x128xf32> to vector<48x128xbf16>
    %cst_13 = arith.constant dense<0.000000e+00> : vector<32x128xf32>
    %16 = tpu.matmul %14, %15, %cst_13 {dimension_numbers = #tpu.dot_dimension_numbers<[1], [0], [0], [1], [0, 0, 1, 1], [], []>} : vector<32x48xbf16>, vector<48x128xbf16>, vector<32x128xf32> -> vector<32x128xf32>
    %cst_14 = arith.constant dense<0.000000e+00> : vector<32xf32>
    %17 = vector.multi_reduction <add>, %16, %cst_14 [1] : vector<32x128xf32> to vector<32xf32>
    %18 = vector.shape_cast %17 : vector<32xf32> to vector<32x1xf32>
    %19 = arith.mulf %16, %16 : vector<32x128xf32>
    %cst_15 = arith.constant dense<0.000000e+00> : vector<32xf32>
    %20 = vector.multi_reduction <add>, %19, %cst_15 [1] : vector<32x128xf32> to vector<32xf32>
    %21 = vector.shape_cast %20 : vector<32xf32> to vector<32x1xf32>
    %c0_16 = arith.constant 0 : index
    %c0_17 = arith.constant 0 : index
    %c0_18 = arith.constant 0 : index
    %22 = vector.load %arg3[%c0_16, %c0_17, %c0_18] : memref<4x32x34xf32, #tpu.memory_space<vmem>>, vector<1x32x34xf32>
    %23 = vector.shape_cast %22 : vector<1x32x34xf32> to vector<32x34xf32>
    %24 = vector.extract_strided_slice %23 {offsets = [0, 0], sizes = [32, 32], strides = [1, 1]} : vector<32x34xf32> to vector<32x32xf32>
    %cst_19 = arith.constant dense<0.000000e+00> : vector<32x1xf32>
    %25 = tpu.matmul %24, %18, %cst_19 {dimension_numbers = #tpu.dot_dimension_numbers<[1], [0], [0], [1], [0, 0, 1, 1], [], []>} : vector<32x32xf32>, vector<32x1xf32>, vector<32x1xf32> -> vector<32x1xf32>
    %cst_20 = arith.constant dense<0.000000e+00> : vector<32x1xf32>
    %26 = tpu.matmul %24, %21, %cst_20 {dimension_numbers = #tpu.dot_dimension_numbers<[1], [0], [0], [1], [0, 0, 1, 1], [], []>} : vector<32x32xf32>, vector<32x1xf32>, vector<32x1xf32> -> vector<32x1xf32>
    %27 = arith.mulf %25, %25 : vector<32x1xf32>
    %28 = arith.subf %26, %27 : vector<32x1xf32>
    %cst_21 = arith.constant 0.000000e+00 : f32
    %29 = vector.broadcast %cst_21 : f32 to vector<32x1xf32>
    %30 = arith.maximumf %28, %29 : vector<32x1xf32>
    %cst_22 = arith.constant 9.99999974E-6 : f32
    %31 = vector.broadcast %cst_22 : f32 to vector<32x1xf32>
    %32 = arith.addf %30, %31 : vector<32x1xf32>
    %33 = math.rsqrt %32 : vector<32x1xf32>
    %c0_23 = arith.constant 0 : index
    %c0_24 = arith.constant 0 : index
    %c0_25 = arith.constant 0 : index
    %34 = vector.load %arg3[%c0_23, %c0_24, %c0_25] : memref<4x32x34xf32, #tpu.memory_space<vmem>>, vector<1x32x34xf32>
    %35 = vector.shape_cast %34 : vector<1x32x34xf32> to vector<32x34xf32>
    %36 = vector.extract_strided_slice %35 {offsets = [0, 32], sizes = [32, 1], strides = [1, 1]} : vector<32x34xf32> to vector<32x1xf32>
    %c0_26 = arith.constant 0 : index
    %c0_27 = arith.constant 0 : index
    %c0_28 = arith.constant 0 : index
    %37 = vector.load %arg3[%c0_26, %c0_27, %c0_28] : memref<4x32x34xf32, #tpu.memory_space<vmem>>, vector<1x32x34xf32>
    %38 = vector.shape_cast %37 : vector<1x32x34xf32> to vector<32x34xf32>
    %39 = vector.extract_strided_slice %38 {offsets = [0, 33], sizes = [32, 1], strides = [1, 1]} : vector<32x34xf32> to vector<32x1xf32>
    %40 = arith.mulf %33, %36 : vector<32x1xf32>
    %41 = arith.mulf %25, %40 : vector<32x1xf32>
    %42 = arith.subf %39, %41 : vector<32x1xf32>
    %43 = vector.broadcast %40 : vector<32x1xf32> to vector<32x128xf32>
    %44 = arith.mulf %16, %43 : vector<32x128xf32>
    %45 = vector.broadcast %42 : vector<32x1xf32> to vector<32x128xf32>
    %46 = arith.addf %44, %45 : vector<32x128xf32>
    %cst_29 = arith.constant 0.000000e+00 : f32
    %47 = vector.broadcast %cst_29 : f32 to vector<32x128xf32>
    %48 = arith.cmpf ogt, %46, %47 : vector<32x128xf32>
    %cst_30 = arith.constant 2.000000e-01 : f32
    %49 = vector.broadcast %cst_30 : f32 to vector<32x128xf32>
    %50 = arith.mulf %49, %46 : vector<32x128xf32>
    %51 = arith.select %48, %46, %50 : vector<32x128xi1>, vector<32x128xf32>
    %52 = arith.truncf %51 : vector<32x128xf32> to vector<32x128xbf16>
    %c3 = arith.constant 3 : index
    %c0_31 = arith.constant 0 : index
    %c0_32 = arith.constant 0 : index
    %53 = vector.load %arg1[%c3, %c0_31, %c0_32] : memref<10x128x128xbf16, #tpu.memory_space<vmem>>, vector<1x128x128xbf16>
    %54 = vector.shape_cast %53 : vector<1x128x128xbf16> to vector<128x128xbf16>
    %cst_33 = arith.constant dense<0.000000e+00> : vector<32x128xf32>
    %55 = tpu.matmul %52, %54, %cst_33 {dimension_numbers = #tpu.dot_dimension_numbers<[1], [0], [0], [1], [0, 0, 1, 1], [], []>} : vector<32x128xbf16>, vector<128x128xbf16>, vector<32x128xf32> -> vector<32x128xf32>
    %c4 = arith.constant 4 : index
    %c0_34 = arith.constant 0 : index
    %c0_35 = arith.constant 0 : index
    %56 = vector.load %arg1[%c4, %c0_34, %c0_35] : memref<10x128x128xbf16, #tpu.memory_space<vmem>>, vector<1x128x128xbf16>
    %57 = vector.shape_cast %56 : vector<1x128x128xbf16> to vector<128x128xbf16>
    %cst_36 = arith.constant dense<0.000000e+00> : vector<32x128xf32>
    %58 = tpu.matmul %52, %57, %cst_36 {dimension_numbers = #tpu.dot_dimension_numbers<[1], [0], [0], [1], [0, 0, 1, 1], [], []>} : vector<32x128xbf16>, vector<128x128xbf16>, vector<32x128xf32> -> vector<32x128xf32>
    %c5 = arith.constant 5 : index
    %c0_37 = arith.constant 0 : index
    %c0_38 = arith.constant 0 : index
    %59 = vector.load %arg1[%c5, %c0_37, %c0_38] : memref<10x128x128xbf16, #tpu.memory_space<vmem>>, vector<1x128x128xbf16>
    %60 = vector.shape_cast %59 : vector<1x128x128xbf16> to vector<128x128xbf16>
    %cst_39 = arith.constant dense<0.000000e+00> : vector<32x128xf32>
    %61 = tpu.matmul %52, %60, %cst_39 {dimension_numbers = #tpu.dot_dimension_numbers<[1], [0], [0], [1], [0, 0, 1, 1], [], []>} : vector<32x128xbf16>, vector<128x128xbf16>, vector<32x128xf32> -> vector<32x128xf32>
    %62 = tpu.concatenate %55, %58, %61 in 0 : vector<32x128xf32>, vector<32x128xf32>, vector<32x128xf32> -> vector<96x128xf32>
    %c1_40 = arith.constant 1 : index
    %c0_41 = arith.constant 0 : index
    %c0_42 = arith.constant 0 : index
    %63 = vector.load %arg2[%c1_40, %c0_41, %c0_42] : memref<4x32x96xbf16, #tpu.memory_space<vmem>>, vector<1x32x96xbf16>
    %64 = vector.shape_cast %63 : vector<1x32x96xbf16> to vector<32x96xbf16>
    %65 = arith.truncf %62 : vector<96x128xf32> to vector<96x128xbf16>
    %cst_43 = arith.constant dense<0.000000e+00> : vector<32x128xf32>
    %66 = tpu.matmul %64, %65, %cst_43 {dimension_numbers = #tpu.dot_dimension_numbers<[1], [0], [0], [1], [0, 0, 1, 1], [], []>} : vector<32x96xbf16>, vector<96x128xbf16>, vector<32x128xf32> -> vector<32x128xf32>
    %cst_44 = arith.constant dense<0.000000e+00> : vector<32xf32>
    %67 = vector.multi_reduction <add>, %66, %cst_44 [1] : vector<32x128xf32> to vector<32xf32>
    %68 = vector.shape_cast %67 : vector<32xf32> to vector<32x1xf32>
    %69 = arith.mulf %66, %66 : vector<32x128xf32>
    %cst_45 = arith.constant dense<0.000000e+00> : vector<32xf32>
    %70 = vector.multi_reduction <add>, %69, %cst_45 [1] : vector<32x128xf32> to vector<32xf32>
    %71 = vector.shape_cast %70 : vector<32xf32> to vector<32x1xf32>
    %c1_46 = arith.constant 1 : index
    %c0_47 = arith.constant 0 : index
    %c0_48 = arith.constant 0 : index
    %72 = vector.load %arg3[%c1_46, %c0_47, %c0_48] : memref<4x32x34xf32, #tpu.memory_space<vmem>>, vector<1x32x34xf32>
    %73 = vector.shape_cast %72 : vector<1x32x34xf32> to vector<32x34xf32>
    %74 = vector.extract_strided_slice %73 {offsets = [0, 0], sizes = [32, 32], strides = [1, 1]} : vector<32x34xf32> to vector<32x32xf32>
    %cst_49 = arith.constant dense<0.000000e+00> : vector<32x1xf32>
    %75 = tpu.matmul %74, %68, %cst_49 {dimension_numbers = #tpu.dot_dimension_numbers<[1], [0], [0], [1], [0, 0, 1, 1], [], []>} : vector<32x32xf32>, vector<32x1xf32>, vector<32x1xf32> -> vector<32x1xf32>
    %cst_50 = arith.constant dense<0.000000e+00> : vector<32x1xf32>
    %76 = tpu.matmul %74, %71, %cst_50 {dimension_numbers = #tpu.dot_dimension_numbers<[1], [0], [0], [1], [0, 0, 1, 1], [], []>} : vector<32x32xf32>, vector<32x1xf32>, vector<32x1xf32> -> vector<32x1xf32>
    %77 = arith.mulf %75, %75 : vector<32x1xf32>
    %78 = arith.subf %76, %77 : vector<32x1xf32>
    %cst_51 = arith.constant 0.000000e+00 : f32
    %79 = vector.broadcast %cst_51 : f32 to vector<32x1xf32>
    %80 = arith.maximumf %78, %79 : vector<32x1xf32>
    %cst_52 = arith.constant 9.99999974E-6 : f32
    %81 = vector.broadcast %cst_52 : f32 to vector<32x1xf32>
    %82 = arith.addf %80, %81 : vector<32x1xf32>
    %83 = math.rsqrt %82 : vector<32x1xf32>
    %c1_53 = arith.constant 1 : index
    %c0_54 = arith.constant 0 : index
    %c0_55 = arith.constant 0 : index
    %84 = vector.load %arg3[%c1_53, %c0_54, %c0_55] : memref<4x32x34xf32, #tpu.memory_space<vmem>>, vector<1x32x34xf32>
    %85 = vector.shape_cast %84 : vector<1x32x34xf32> to vector<32x34xf32>
    %86 = vector.extract_strided_slice %85 {offsets = [0, 32], sizes = [32, 1], strides = [1, 1]} : vector<32x34xf32> to vector<32x1xf32>
    %c1_56 = arith.constant 1 : index
    %c0_57 = arith.constant 0 : index
    %c0_58 = arith.constant 0 : index
    %87 = vector.load %arg3[%c1_56, %c0_57, %c0_58] : memref<4x32x34xf32, #tpu.memory_space<vmem>>, vector<1x32x34xf32>
    %88 = vector.shape_cast %87 : vector<1x32x34xf32> to vector<32x34xf32>
    %89 = vector.extract_strided_slice %88 {offsets = [0, 33], sizes = [32, 1], strides = [1, 1]} : vector<32x34xf32> to vector<32x1xf32>
    %90 = arith.mulf %83, %86 : vector<32x1xf32>
    %91 = arith.mulf %75, %90 : vector<32x1xf32>
    %92 = arith.subf %89, %91 : vector<32x1xf32>
    %93 = vector.broadcast %90 : vector<32x1xf32> to vector<32x128xf32>
    %94 = arith.mulf %66, %93 : vector<32x128xf32>
    %95 = vector.broadcast %92 : vector<32x1xf32> to vector<32x128xf32>
    %96 = arith.addf %94, %95 : vector<32x128xf32>
    %cst_59 = arith.constant 0.000000e+00 : f32
    %97 = vector.broadcast %cst_59 : f32 to vector<32x128xf32>
    %98 = arith.cmpf ogt, %96, %97 : vector<32x128xf32>
    %cst_60 = arith.constant 2.000000e-01 : f32
    %99 = vector.broadcast %cst_60 : f32 to vector<32x128xf32>
    %100 = arith.mulf %99, %96 : vector<32x128xf32>
    %101 = arith.select %98, %96, %100 : vector<32x128xi1>, vector<32x128xf32>
    %102 = arith.truncf %101 : vector<32x128xf32> to vector<32x128xbf16>
    %c6 = arith.constant 6 : index
    %c0_61 = arith.constant 0 : index
    %c0_62 = arith.constant 0 : index
    %103 = vector.load %arg1[%c6, %c0_61, %c0_62] : memref<10x128x128xbf16, #tpu.memory_space<vmem>>, vector<1x128x128xbf16>
    %104 = vector.shape_cast %103 : vector<1x128x128xbf16> to vector<128x128xbf16>
    %cst_63 = arith.constant dense<0.000000e+00> : vector<32x128xf32>
    %105 = tpu.matmul %102, %104, %cst_63 {dimension_numbers = #tpu.dot_dimension_numbers<[1], [0], [0], [1], [0, 0, 1, 1], [], []>} : vector<32x128xbf16>, vector<128x128xbf16>, vector<32x128xf32> -> vector<32x128xf32>
    %c7 = arith.constant 7 : index
    %c0_64 = arith.constant 0 : index
    %c0_65 = arith.constant 0 : index
    %106 = vector.load %arg1[%c7, %c0_64, %c0_65] : memref<10x128x128xbf16, #tpu.memory_space<vmem>>, vector<1x128x128xbf16>
    %107 = vector.shape_cast %106 : vector<1x128x128xbf16> to vector<128x128xbf16>
    %cst_66 = arith.constant dense<0.000000e+00> : vector<32x128xf32>
    %108 = tpu.matmul %102, %107, %cst_66 {dimension_numbers = #tpu.dot_dimension_numbers<[1], [0], [0], [1], [0, 0, 1, 1], [], []>} : vector<32x128xbf16>, vector<128x128xbf16>, vector<32x128xf32> -> vector<32x128xf32>
    %c8 = arith.constant 8 : index
    %c0_67 = arith.constant 0 : index
    %c0_68 = arith.constant 0 : index
    %109 = vector.load %arg1[%c8, %c0_67, %c0_68] : memref<10x128x128xbf16, #tpu.memory_space<vmem>>, vector<1x128x128xbf16>
    %110 = vector.shape_cast %109 : vector<1x128x128xbf16> to vector<128x128xbf16>
    %cst_69 = arith.constant dense<0.000000e+00> : vector<32x128xf32>
    %111 = tpu.matmul %102, %110, %cst_69 {dimension_numbers = #tpu.dot_dimension_numbers<[1], [0], [0], [1], [0, 0, 1, 1], [], []>} : vector<32x128xbf16>, vector<128x128xbf16>, vector<32x128xf32> -> vector<32x128xf32>
    %112 = tpu.concatenate %105, %108, %111 in 0 : vector<32x128xf32>, vector<32x128xf32>, vector<32x128xf32> -> vector<96x128xf32>
    %c2_70 = arith.constant 2 : index
    %c0_71 = arith.constant 0 : index
    %c0_72 = arith.constant 0 : index
    %113 = vector.load %arg2[%c2_70, %c0_71, %c0_72] : memref<4x32x96xbf16, #tpu.memory_space<vmem>>, vector<1x32x96xbf16>
    %114 = vector.shape_cast %113 : vector<1x32x96xbf16> to vector<32x96xbf16>
    %115 = arith.truncf %112 : vector<96x128xf32> to vector<96x128xbf16>
    %cst_73 = arith.constant dense<0.000000e+00> : vector<32x128xf32>
    %116 = tpu.matmul %114, %115, %cst_73 {dimension_numbers = #tpu.dot_dimension_numbers<[1], [0], [0], [1], [0, 0, 1, 1], [], []>} : vector<32x96xbf16>, vector<96x128xbf16>, vector<32x128xf32> -> vector<32x128xf32>
    %cst_74 = arith.constant dense<0.000000e+00> : vector<32xf32>
    %117 = vector.multi_reduction <add>, %116, %cst_74 [1] : vector<32x128xf32> to vector<32xf32>
    %118 = vector.shape_cast %117 : vector<32xf32> to vector<32x1xf32>
    %119 = arith.mulf %116, %116 : vector<32x128xf32>
    %cst_75 = arith.constant dense<0.000000e+00> : vector<32xf32>
    %120 = vector.multi_reduction <add>, %119, %cst_75 [1] : vector<32x128xf32> to vector<32xf32>
    %121 = vector.shape_cast %120 : vector<32xf32> to vector<32x1xf32>
    %c2_76 = arith.constant 2 : index
    %c0_77 = arith.constant 0 : index
    %c0_78 = arith.constant 0 : index
    %122 = vector.load %arg3[%c2_76, %c0_77, %c0_78] : memref<4x32x34xf32, #tpu.memory_space<vmem>>, vector<1x32x34xf32>
    %123 = vector.shape_cast %122 : vector<1x32x34xf32> to vector<32x34xf32>
    %124 = vector.extract_strided_slice %123 {offsets = [0, 0], sizes = [32, 32], strides = [1, 1]} : vector<32x34xf32> to vector<32x32xf32>
    %cst_79 = arith.constant dense<0.000000e+00> : vector<32x1xf32>
    %125 = tpu.matmul %124, %118, %cst_79 {dimension_numbers = #tpu.dot_dimension_numbers<[1], [0], [0], [1], [0, 0, 1, 1], [], []>} : vector<32x32xf32>, vector<32x1xf32>, vector<32x1xf32> -> vector<32x1xf32>
    %cst_80 = arith.constant dense<0.000000e+00> : vector<32x1xf32>
    %126 = tpu.matmul %124, %121, %cst_80 {dimension_numbers = #tpu.dot_dimension_numbers<[1], [0], [0], [1], [0, 0, 1, 1], [], []>} : vector<32x32xf32>, vector<32x1xf32>, vector<32x1xf32> -> vector<32x1xf32>
    %127 = arith.mulf %125, %125 : vector<32x1xf32>
    %128 = arith.subf %126, %127 : vector<32x1xf32>
    %cst_81 = arith.constant 0.000000e+00 : f32
    %129 = vector.broadcast %cst_81 : f32 to vector<32x1xf32>
    %130 = arith.maximumf %128, %129 : vector<32x1xf32>
    %cst_82 = arith.constant 9.99999974E-6 : f32
    %131 = vector.broadcast %cst_82 : f32 to vector<32x1xf32>
    %132 = arith.addf %130, %131 : vector<32x1xf32>
    %133 = math.rsqrt %132 : vector<32x1xf32>
    %c2_83 = arith.constant 2 : index
    %c0_84 = arith.constant 0 : index
    %c0_85 = arith.constant 0 : index
    %134 = vector.load %arg3[%c2_83, %c0_84, %c0_85] : memref<4x32x34xf32, #tpu.memory_space<vmem>>, vector<1x32x34xf32>
    %135 = vector.shape_cast %134 : vector<1x32x34xf32> to vector<32x34xf32>
    %136 = vector.extract_strided_slice %135 {offsets = [0, 32], sizes = [32, 1], strides = [1, 1]} : vector<32x34xf32> to vector<32x1xf32>
    %c2_86 = arith.constant 2 : index
    %c0_87 = arith.constant 0 : index
    %c0_88 = arith.constant 0 : index
    %137 = vector.load %arg3[%c2_86, %c0_87, %c0_88] : memref<4x32x34xf32, #tpu.memory_space<vmem>>, vector<1x32x34xf32>
    %138 = vector.shape_cast %137 : vector<1x32x34xf32> to vector<32x34xf32>
    %139 = vector.extract_strided_slice %138 {offsets = [0, 33], sizes = [32, 1], strides = [1, 1]} : vector<32x34xf32> to vector<32x1xf32>
    %140 = arith.mulf %133, %136 : vector<32x1xf32>
    %141 = arith.mulf %125, %140 : vector<32x1xf32>
    %142 = arith.subf %139, %141 : vector<32x1xf32>
    %143 = vector.broadcast %140 : vector<32x1xf32> to vector<32x128xf32>
    %144 = arith.mulf %116, %143 : vector<32x128xf32>
    %145 = vector.broadcast %142 : vector<32x1xf32> to vector<32x128xf32>
    %146 = arith.addf %144, %145 : vector<32x128xf32>
    %cst_89 = arith.constant 0.000000e+00 : f32
    %147 = vector.broadcast %cst_89 : f32 to vector<32x128xf32>
    %148 = arith.cmpf ogt, %146, %147 : vector<32x128xf32>
    %cst_90 = arith.constant 2.000000e-01 : f32
    %149 = vector.broadcast %cst_90 : f32 to vector<32x128xf32>
    %150 = arith.mulf %149, %146 : vector<32x128xf32>
    %151 = arith.select %148, %146, %150 : vector<32x128xi1>, vector<32x128xf32>
    %152 = arith.truncf %151 : vector<32x128xf32> to vector<32x128xbf16>
    %c9 = arith.constant 9 : index
    %c0_91 = arith.constant 0 : index
    %c0_92 = arith.constant 0 : index
    %153 = vector.load %arg1[%c9, %c0_91, %c0_92] : memref<10x128x128xbf16, #tpu.memory_space<vmem>>, vector<1x128x128xbf16>
    %154 = vector.shape_cast %153 : vector<1x128x128xbf16> to vector<128x128xbf16>
    %cst_93 = arith.constant dense<0.000000e+00> : vector<32x128xf32>
    %155 = tpu.matmul %152, %154, %cst_93 {dimension_numbers = #tpu.dot_dimension_numbers<[1], [0], [0], [1], [0, 0, 1, 1], [], []>} : vector<32x128xbf16>, vector<128x128xbf16>, vector<32x128xf32> -> vector<32x128xf32>
    %c3_94 = arith.constant 3 : index
    %c0_95 = arith.constant 0 : index
    %c0_96 = arith.constant 0 : index
    %156 = vector.load %arg2[%c3_94, %c0_95, %c0_96] : memref<4x32x96xbf16, #tpu.memory_space<vmem>>, vector<1x32x96xbf16>
    %157 = vector.shape_cast %156 : vector<1x32x96xbf16> to vector<32x96xbf16>
    %158 = vector.extract_strided_slice %157 {offsets = [0, 0], sizes = [32, 32], strides = [1, 1]} : vector<32x96xbf16> to vector<32x32xbf16>
    %159 = arith.truncf %155 : vector<32x128xf32> to vector<32x128xbf16>
    %cst_97 = arith.constant dense<0.000000e+00> : vector<32x128xf32>
    %160 = tpu.matmul %158, %159, %cst_97 {dimension_numbers = #tpu.dot_dimension_numbers<[1], [0], [0], [1], [0, 0, 1, 1], [], []>} : vector<32x32xbf16>, vector<32x128xbf16>, vector<32x128xf32> -> vector<32x128xf32>
    %cst_98 = arith.constant dense<0.000000e+00> : vector<32xf32>
    %161 = vector.multi_reduction <add>, %160, %cst_98 [1] : vector<32x128xf32> to vector<32xf32>
    %162 = vector.shape_cast %161 : vector<32xf32> to vector<32x1xf32>
    %163 = arith.mulf %160, %160 : vector<32x128xf32>
    %cst_99 = arith.constant dense<0.000000e+00> : vector<32xf32>
    %164 = vector.multi_reduction <add>, %163, %cst_99 [1] : vector<32x128xf32> to vector<32xf32>
    %165 = vector.shape_cast %164 : vector<32xf32> to vector<32x1xf32>
    %c3_100 = arith.constant 3 : index
    %c0_101 = arith.constant 0 : index
    %c0_102 = arith.constant 0 : index
    %166 = vector.load %arg3[%c3_100, %c0_101, %c0_102] : memref<4x32x34xf32, #tpu.memory_space<vmem>>, vector<1x32x34xf32>
    %167 = vector.shape_cast %166 : vector<1x32x34xf32> to vector<32x34xf32>
    %168 = vector.extract_strided_slice %167 {offsets = [0, 0], sizes = [32, 32], strides = [1, 1]} : vector<32x34xf32> to vector<32x32xf32>
    %cst_103 = arith.constant dense<0.000000e+00> : vector<32x1xf32>
    %169 = tpu.matmul %168, %162, %cst_103 {dimension_numbers = #tpu.dot_dimension_numbers<[1], [0], [0], [1], [0, 0, 1, 1], [], []>} : vector<32x32xf32>, vector<32x1xf32>, vector<32x1xf32> -> vector<32x1xf32>
    %cst_104 = arith.constant dense<0.000000e+00> : vector<32x1xf32>
    %170 = tpu.matmul %168, %165, %cst_104 {dimension_numbers = #tpu.dot_dimension_numbers<[1], [0], [0], [1], [0, 0, 1, 1], [], []>} : vector<32x32xf32>, vector<32x1xf32>, vector<32x1xf32> -> vector<32x1xf32>
    %171 = arith.mulf %169, %169 : vector<32x1xf32>
    %172 = arith.subf %170, %171 : vector<32x1xf32>
    %cst_105 = arith.constant 0.000000e+00 : f32
    %173 = vector.broadcast %cst_105 : f32 to vector<32x1xf32>
    %174 = arith.maximumf %172, %173 : vector<32x1xf32>
    %cst_106 = arith.constant 9.99999974E-6 : f32
    %175 = vector.broadcast %cst_106 : f32 to vector<32x1xf32>
    %176 = arith.addf %174, %175 : vector<32x1xf32>
    %177 = math.rsqrt %176 : vector<32x1xf32>
    %c3_107 = arith.constant 3 : index
    %c0_108 = arith.constant 0 : index
    %c0_109 = arith.constant 0 : index
    %178 = vector.load %arg3[%c3_107, %c0_108, %c0_109] : memref<4x32x34xf32, #tpu.memory_space<vmem>>, vector<1x32x34xf32>
    %179 = vector.shape_cast %178 : vector<1x32x34xf32> to vector<32x34xf32>
    %180 = vector.extract_strided_slice %179 {offsets = [0, 32], sizes = [32, 1], strides = [1, 1]} : vector<32x34xf32> to vector<32x1xf32>
    %c3_110 = arith.constant 3 : index
    %c0_111 = arith.constant 0 : index
    %c0_112 = arith.constant 0 : index
    %181 = vector.load %arg3[%c3_110, %c0_111, %c0_112] : memref<4x32x34xf32, #tpu.memory_space<vmem>>, vector<1x32x34xf32>
    %182 = vector.shape_cast %181 : vector<1x32x34xf32> to vector<32x34xf32>
    %183 = vector.extract_strided_slice %182 {offsets = [0, 33], sizes = [32, 1], strides = [1, 1]} : vector<32x34xf32> to vector<32x1xf32>
    %184 = arith.mulf %177, %180 : vector<32x1xf32>
    %185 = arith.mulf %169, %184 : vector<32x1xf32>
    %186 = arith.subf %183, %185 : vector<32x1xf32>
    %187 = vector.broadcast %184 : vector<32x1xf32> to vector<32x128xf32>
    %188 = arith.mulf %160, %187 : vector<32x128xf32>
    %189 = vector.broadcast %186 : vector<32x1xf32> to vector<32x128xf32>
    %190 = arith.addf %188, %189 : vector<32x128xf32>
    %cst_113 = arith.constant 0.000000e+00 : f32
    %191 = vector.broadcast %cst_113 : f32 to vector<32x128xf32>
    %192 = arith.cmpf ogt, %190, %191 : vector<32x128xf32>
    %cst_114 = arith.constant 2.000000e-01 : f32
    %193 = vector.broadcast %cst_114 : f32 to vector<32x128xf32>
    %194 = arith.mulf %193, %190 : vector<32x128xf32>
    %195 = arith.select %192, %190, %194 : vector<32x128xi1>, vector<32x128xf32>
    %c0_115 = arith.constant 0 : index
    %c0_116 = arith.constant 0 : index
    %196 = vector.load %arg4[%c0_115, %c0_116] : memref<32x128xf32, #tpu.memory_space<vmem>>, vector<32x128xf32>
    tpu.vector_store %arg4[%c0_115, %c0_116], %195 {strides = array<i32>} : memref<32x128xf32, #tpu.memory_space<vmem>>, vector<32x128xf32>,
    return
  }
}

</mosaic_0001>

<llo_original>
// kernel: tpu_custom_call.1
$region0: #{tpu_custom_call.1}
  #allocation0 [shape = 'u32[]', space=smem, size = 0x4, offset = 0x4, fixed_abs, tag = 'smem constant byte address 0x4 - core index']
  #allocation1 [shape = 'u32[144,128]{1,0:T(1,128)}', space=vmem, size = 0x12000, scoped, tag = 'internal scratch']
  %s0 = inlined_call_operand.hbm [shape: f32[16,128], index: 0, kind: input, shape index: {}]
  %s1 = inlined_call_operand.hbm [shape: bf16[10,128,128], index: 1, kind: input, shape index: {}]
  %s2 = inlined_call_operand.hbm [shape: bf16[4,32,96], index: 2, kind: input, shape index: {}]
  %s3 = inlined_call_operand.hbm [shape: f32[4,32,34], index: 3, kind: input, shape index: {}]
  %s4 = inlined_call_operand.hbm [shape: f32[32,128], index: 4, kind: output, shape index: {}]
  %s5 = sld [smem:[#allocation0]]
  $region42: #{tpu_custom_call.1} parent=0
    _
  %s7 = ssub.s32 1, %s5
  %s8 = scalar_select 0, %s7, %s5
  $region1: #{tpu_custom_call.1} parent=0
    #allocation2 [shape = 'u8[8192]{0}', space=vmem, size = 0x2000, scoped, tag = 'input window, operand 0, single buffered']
    #allocation3 [shape = 's32[1]{0}', space=sflag, size = 0x4, scoped, tag = 'scoped memory for tpu_custom_call.1']
    #allocation4 [shape = 's32[1]{0}', space=sflag, size = 0x4, scoped, tag = 'scoped memory for tpu_custom_call.1']
    #allocation5 [shape = 'u8[327680]{0}', space=vmem, size = 0x50000, scoped, tag = 'input window, operand 1, single buffered']
    #allocation6 [shape = 's32[1]{0}', space=sflag, size = 0x4, scoped, tag = 'scoped memory for tpu_custom_call.1']
    #allocation7 [shape = 'u8[32768]{0}', space=vmem, size = 0x8000, scoped, tag = 'input window, operand 2, single buffered']
    #allocation8 [shape = 'u8[65536]{0}', space=vmem, size = 0x10000, scoped, tag = 'input window, operand 3, single buffered']
    #allocation9 [shape = 's32[1]{0}', space=sflag, size = 0x4, scoped, tag = 'scoped memory for tpu_custom_call.1']
    #allocation10 [shape = 'u8[16384]{0}', space=vmem, size = 0x4000, scoped, tag = 'output window, operand 0, single buffered']
    %9 = vsyncpa [#allocation3], 0
    %10 = vsyncpa [#allocation6], 0
    %11 = vsyncpa [#allocation9], 0
    %12 = vsyncpa [#allocation4], 0
    // Predicated region
    $region2: #{tpu_custom_call.1} parent=1 // pred_check
      _
    $region3: #{tpu_custom_call.1} parent=1 // pred_check_branch
      %14 = sbr.rel (0) target = $region5
    $region4: #{tpu_custom_call.1} parent=1 // pred_region
      %s16 = ssub.s32 256, 256
      %17 = vsyncadd [#allocation3], %s16
      %s18 = sshll.u32 [#allocation2], 4
      %s19 = int_to_ptr.vmem [resolvable:$true] %s18
      %24 = dma.hbm_to_vmem [thread:$0]  %s0, 256, %s19, [#allocation3], 128, 128, 8
    $region5: #{tpu_custom_call.1} parent=1 // pred_fallthru
      _
    // Predicated region
    $region6: #{tpu_custom_call.1} parent=1 // pred_check
      _
    $region7: #{tpu_custom_call.1} parent=1 // pred_check_branch
      %26 = sbr.rel (0) target = $region9
    $region8: #{tpu_custom_call.1} parent=1 // pred_region
      %s28 = ssub.s32 10240, 10240
      %29 = vsyncadd [#allocation6], %s28
      %s30 = sshll.u32 [#allocation5], 4
      %s31 = int_to_ptr.vmem [resolvable:$true] %s30
      %36 = dma.hbm_to_vmem [thread:$0]  %s1, 10240, %s31, [#allocation6], 64, 64, 4
    $region9: #{tpu_custom_call.1} parent=1 // pred_fallthru
      _
    // Predicated region
    $region10: #{tpu_custom_call.1} parent=1 // pred_check
      _
    $region11: #{tpu_custom_call.1} parent=1 // pred_check_branch
      %38 = sbr.rel (0) target = $region13
    $region12: #{tpu_custom_call.1} parent=1 // pred_region
      %s40 = ssub.s32 1024, 1024
      %41 = vsyncadd [#allocation6], %s40
      %s42 = sshll.u32 [#allocation7], 4
      %s43 = int_to_ptr.vmem [resolvable:$true] %s42
      %48 = dma.hbm_to_vmem [thread:$0]  %s2, 1024, %s43, [#allocation6], 64, 64, 4
    $region13: #{tpu_custom_call.1} parent=1 // pred_fallthru
      _
    // Predicated region
    $region14: #{tpu_custom_call.1} parent=1 // pred_check
      _
    $region15: #{tpu_custom_call.1} parent=1 // pred_check_branch
      %50 = sbr.rel (0) target = $region17
    $region16: #{tpu_custom_call.1} parent=1 // pred_region
      %s52 = ssub.s32 2048, 2048
      %53 = vsyncadd [#allocation9], %s52
      %s54 = sshll.u32 [#allocation8], 4
      %s55 = int_to_ptr.vmem [resolvable:$true] %s54
      %60 = dma.hbm_to_vmem [thread:$0]  %s3, 2048, %s55, [#allocation9], 128, 128, 8
    $region17: #{tpu_custom_call.1} parent=1 // pred_fallthru
      _
    // Predicated region
    $region18: #{tpu_custom_call.1} parent=1 // pred_check
      _
    $region19: #{tpu_custom_call.1} parent=1 // pred_check_branch
      %62 = sbr.rel (0) target = $region21
    $region20: #{tpu_custom_call.1} parent=1 // pred_region
      %63 = dma.done [#allocation3], 256
    $region21: #{tpu_custom_call.1} parent=1 // pred_fallthru
      _
    // Predicated region
    $region22: #{tpu_custom_call.1} parent=1 // pred_check
      _
    $region23: #{tpu_custom_call.1} parent=1 // pred_check_branch
      %65 = sbr.rel (0) target = $region25
    $region24: #{tpu_custom_call.1} parent=1 // pred_region
      %66 = dma.done [#allocation6], 10240
    $region25: #{tpu_custom_call.1} parent=1 // pred_fallthru
      _
    // Predicated region
    $region26: #{tpu_custom_call.1} parent=1 // pred_check
      _
    $region27: #{tpu_custom_call.1} parent=1 // pred_check_branch
      %68 = sbr.rel (0) target = $region29
    $region28: #{tpu_custom_call.1} parent=1 // pred_region
      %69 = dma.done [#allocation6], 1024
    $region29: #{tpu_custom_call.1} parent=1 // pred_fallthru
      _
    // Predicated region
    $region30: #{tpu_custom_call.1} parent=1 // pred_check
      _
    $region31: #{tpu_custom_call.1} parent=1 // pred_check_branch
      %71 = sbr.rel (0) target = $region33
    $region32: #{tpu_custom_call.1} parent=1 // pred_region
      %72 = dma.done [#allocation9], 2048
    $region33: #{tpu_custom_call.1} parent=1 // pred_fallthru
      _
    %v74 = vld [vmem:[#allocation2] sm:$0xff]
    %v75 = vld [vmem:[#allocation2 + $0x8] sm:$0xff]
    %v76 = vpack.c.bf16 %v75, %v74
    %v77 = vld [vmem:[#allocation5] sm:$0xf]
    %v78 = vld [vmem:[#allocation5 + $0x4] sm:$0xf]
    %v79 = vld [vmem:[#allocation5 + $0x8] sm:$0xf]
    %v80 = vld [vmem:[#allocation5 + $0xc] sm:$0xf]
    %v81 = vld [vmem:[#allocation5 + $0x10] sm:$0xf]
    %v82 = vld [vmem:[#allocation5 + $0x14] sm:$0xf]
    %v83 = vld [vmem:[#allocation5 + $0x18] sm:$0xf]
    %v84 = vld [vmem:[#allocation5 + $0x1c] sm:$0xf]
    %v85 = vld [vmem:[#allocation5 + $0x20] sm:$0xf]
    %v86 = vld [vmem:[#allocation5 + $0x24] sm:$0xf]
    %v87 = vld [vmem:[#allocation5 + $0x28] sm:$0xf]
    %v88 = vld [vmem:[#allocation5 + $0x2c] sm:$0xf]
    %v89 = vld [vmem:[#allocation5 + $0x30] sm:$0xf]
    %v90 = vld [vmem:[#allocation5 + $0x34] sm:$0xf]
    %v91 = vld [vmem:[#allocation5 + $0x38] sm:$0xf]
    %v92 = vld [vmem:[#allocation5 + $0x3c] sm:$0xf]
    %v109 = vunpack.c.l.b16 %v77
    %v110 = vunpack.c.l.b16 %v78
    %v111 = vunpack.c.l.b16 %v79
    %v112 = vunpack.c.l.b16 %v80
    %v113 = vunpack.c.l.b16 %v81
    %v114 = vunpack.c.l.b16 %v82
    %v115 = vunpack.c.l.b16 %v83
    %v116 = vunpack.c.l.b16 %v84
    %v117 = vunpack.c.l.b16 %v85
    %v118 = vunpack.c.l.b16 %v86
    %v119 = vunpack.c.l.b16 %v87
    %v120 = vunpack.c.l.b16 %v88
    %v121 = vunpack.c.l.b16 %v89
    %v122 = vunpack.c.l.b16 %v90
    %v123 = vunpack.c.l.b16 %v91
    %v124 = vunpack.c.l.b16 %v92
    %v125 = vpack.c.b16 %v110, %v109
    %v126 = vpack.c.b16 %v112, %v111
    %v127 = vpack.c.b16 %v114, %v113
    %v128 = vpack.c.b16 %v116, %v115
    %v129 = vpack.c.b16 %v118, %v117
    %v130 = vpack.c.b16 %v120, %v119
    %v131 = vpack.c.b16 %v122, %v121
    %v132 = vpack.c.b16 %v124, %v123
    %141 = vmatprep.subr.bf16.mxu0 0
    %142 = vmatpush1.bf16.msra.mxu0 %v125
    %143 = vmatprep.subr.bf16.mxu0 0
    %144 = vmatpush1.bf16.msra.mxu0 %v126
    %145 = vmatprep.subr.bf16.mxu0 0
    %146 = vmatpush1.bf16.msra.mxu0 %v127
    %147 = vmatprep.subr.bf16.mxu0 0
    %148 = vmatpush1.bf16.msra.mxu0 %v128
    %149 = vmatprep.subr.bf16.mxu0 0
    %150 = vmatpush1.bf16.msra.mxu0 %v129
    %151 = vmatprep.subr.bf16.mxu0 0
    %152 = vmatpush1.bf16.msra.mxu0 %v130
    %153 = vmatprep.subr.bf16.mxu0 0
    %154 = vmatpush1.bf16.msra.mxu0 %v131
    %155 = vmatprep.subr.bf16.mxu0 0
    %156 = vmatpush1.bf16.msra.mxu0 %v132
    %157 = vmatprep.subr.bf16.mxu0 0
    %158 = vmatpush1.bf16.msra.mxu0 0
    %159 = vmatprep.subr.bf16.mxu0 0
    %160 = vmatpush1.bf16.msra.mxu0 0
    %161 = vmatprep.subr.bf16.mxu0 0
    %162 = vmatpush1.bf16.msra.mxu0 0
    %163 = vmatprep.subr.bf16.mxu0 0
    %164 = vmatpush1.bf16.msra.mxu0 0
    %165 = vmatprep.subr.bf16.mxu0 0
    %166 = vmatpush1.bf16.msra.mxu0 0
    %167 = vmatprep.subr.bf16.mxu0 0
    %168 = vmatpush1.bf16.msra.mxu0 0
    %169 = vmatprep.subr.bf16.mxu0 0
    %170 = vmatpush1.bf16.msra.mxu0 0
    %171 = vmatprep.subr.bf16.mxu0 0
    %172 = vmatpush1.bf16.msra.mxu0 0
    %173 = vmatprep.mubr.bf16.mxu0 0
    %174 = vmatmul.mubr.bf16.gmra.mrb[0].mxu0 %v76
    %v175 = vpop.f32.mrb[0].mxu0
    %v176 = vadd.f32 0.0, %v175
    %v177 = vpop.f32.mrb[0].mxu0
    %v178 = vpop.f32.mrb[0].mxu0
    %v179 = vadd.f32 0.0, %v178
    %v180 = vpop.f32.mrb[0].mxu0
    %181 = vdwg.mxu0
    %s182 = scalar_lea.vmem [#allocation5], 64
    %v183 = vld [vmem:[%s182] sm:$0xf]
    %v184 = vld [vmem:[%s182 + $0x4] sm:$0xf]
    %v185 = vld [vmem:[%s182 + $0x8] sm:$0xf]
    %v186 = vld [vmem:[%s182 + $0xc] sm:$0xf]
    %v187 = vld [vmem:[%s182 + $0x10] sm:$0xf]
    %v188 = vld [vmem:[%s182 + $0x14] sm:$0xf]
    %v189 = vld [vmem:[%s182 + $0x18] sm:$0xf]
    %v190 = vld [vmem:[%s182 + $0x1c] sm:$0xf]
    %v191 = vld [vmem:[%s182 + $0x20] sm:$0xf]
    %v192 = vld [vmem:[%s182 + $0x24] sm:$0xf]
    %v193 = vld [vmem:[%s182 + $0x28] sm:$0xf]
    %v194 = vld [vmem:[%s182 + $0x2c] sm:$0xf]
    %v195 = vld [vmem:[%s182 + $0x30] sm:$0xf]
    %v196 = vld [vmem:[%s182 + $0x34] sm:$0xf]
    %v197 = vld [vmem:[%s182 + $0x38] sm:$0xf]
    %v198 = vld [vmem:[%s182 + $0x3c] sm:$0xf]
    %v215 = vunpack.c.l.b16 %v183
    %v216 = vunpack.c.l.b16 %v184
    %v217 = vunpack.c.l.b16 %v185
    %v218 = vunpack.c.l.b16 %v186
    %v219 = vunpack.c.l.b16 %v187
    %v220 = vunpack.c.l.b16 %v188
    %v221 = vunpack.c.l.b16 %v189
    %v222 = vunpack.c.l.b16 %v190
    %v223 = vunpack.c.l.b16 %v191
    %v224 = vunpack.c.l.b16 %v192
    %v225 = vunpack.c.l.b16 %v193
    %v226 = vunpack.c.l.b16 %v194
    %v227 = vunpack.c.l.b16 %v195
    %v228 = vunpack.c.l.b16 %v196
    %v229 = vunpack.c.l.b16 %v197
    %v230 = vunpack.c.l.b16 %v198
    %v231 = vpack.c.b16 %v216, %v215
    %v232 = vpack.c.b16 %v218, %v217
    %v233 = vpack.c.b16 %v220, %v219
    %v234 = vpack.c.b16 %v222, %v221
    %v235 = vpack.c.b16 %v224, %v223
    %v236 = vpack.c.b16 %v226, %v225
    %v237 = vpack.c.b16 %v228, %v227
    %v238 = vpack.c.b16 %v230, %v229
    %247 = vmatprep.subr.bf16.mxu0 0
    %248 = vmatpush1.bf16.msra.mxu0 %v231
    %249 = vmatprep.subr.bf16.mxu0 0
    %250 = vmatpush1.bf16.msra.mxu0 %v232
    %251 = vmatprep.subr.bf16.mxu0 0
    %252 = vmatpush1.bf16.msra.mxu0 %v233
    %253 = vmatprep.subr.bf16.mxu0 0
    %254 = vmatpush1.bf16.msra.mxu0 %v234
    %255 = vmatprep.subr.bf16.mxu0 0
    %256 = vmatpush1.bf16.msra.mxu0 %v235
    %257 = vmatprep.subr.bf16.mxu0 0
    %258 = vmatpush1.bf16.msra.mxu0 %v236
    %259 = vmatprep.subr.bf16.mxu0 0
    %260 = vmatpush1.bf16.msra.mxu0 %v237
    %261 = vmatprep.subr.bf16.mxu0 0
    %262 = vmatpush1.bf16.msra.mxu0 %v238
    %263 = vmatprep.subr.bf16.mxu0 0
    %264 = vmatpush1.bf16.msra.mxu0 0
    %265 = vmatprep.subr.bf16.mxu0 0
    %266 = vmatpush1.bf16.msra.mxu0 0
    %267 = vmatprep.subr.bf16.mxu0 0
    %268 = vmatpush1.bf16.msra.mxu0 0
    %269 = vmatprep.subr.bf16.mxu0 0
    %270 = vmatpush1.bf16.msra.mxu0 0
    %271 = vmatprep.subr.bf16.mxu0 0
    %272 = vmatpush1.bf16.msra.mxu0 0
    %273 = vmatprep.subr.bf16.mxu0 0
    %274 = vmatpush1.bf16.msra.mxu0 0
    %275 = vmatprep.subr.bf16.mxu0 0
    %276 = vmatpush1.bf16.msra.mxu0 0
    %277 = vmatprep.subr.bf16.mxu0 0
    %278 = vmatpush1.bf16.msra.mxu0 0
    %279 = vmatprep.mubr.bf16.mxu0 0
    %280 = vmatmul.mubr.bf16.gmra.mrb[0].mxu0 %v76
    %v281 = vpop.f32.mrb[0].mxu0
    %v282 = vadd.f32 0.0, %v281
    %v283 = vpop.f32.mrb[0].mxu0
    %v284 = vpop.f32.mrb[0].mxu0
    %v285 = vadd.f32 0.0, %v284
    %v286 = vpop.f32.mrb[0].mxu0
    %287 = vdwg.mxu0
    %s288 = scalar_lea.vmem [#allocation5], 128
    %v289 = vld [vmem:[%s288] sm:$0xf]
    %v290 = vld [vmem:[%s288 + $0x4] sm:$0xf]
    %v291 = vld [vmem:[%s288 + $0x8] sm:$0xf]
    %v292 = vld [vmem:[%s288 + $0xc] sm:$0xf]
    %v293 = vld [vmem:[%s288 + $0x10] sm:$0xf]
    %v294 = vld [vmem:[%s288 + $0x14] sm:$0xf]
    %v295 = vld [vmem:[%s288 + $0x18] sm:$0xf]
    %v296 = vld [vmem:[%s288 + $0x1c] sm:$0xf]
    %v297 = vld [vmem:[%s288 + $0x20] sm:$0xf]
    %v298 = vld [vmem:[%s288 + $0x24] sm:$0xf]
    %v299 = vld [vmem:[%s288 + $0x28] sm:$0xf]
    %v300 = vld [vmem:[%s288 + $0x2c] sm:$0xf]
    %v301 = vld [vmem:[%s288 + $0x30] sm:$0xf]
    %v302 = vld [vmem:[%s288 + $0x34] sm:$0xf]
    %v303 = vld [vmem:[%s288 + $0x38] sm:$0xf]
    %v304 = vld [vmem:[%s288 + $0x3c] sm:$0xf]
    %v321 = vunpack.c.l.b16 %v289
    %v322 = vunpack.c.l.b16 %v290
    %v323 = vunpack.c.l.b16 %v291
    %v324 = vunpack.c.l.b16 %v292
    %v325 = vunpack.c.l.b16 %v293
    %v326 = vunpack.c.l.b16 %v294
    %v327 = vunpack.c.l.b16 %v295
    %v328 = vunpack.c.l.b16 %v296
    %v329 = vunpack.c.l.b16 %v297
    %v330 = vunpack.c.l.b16 %v298
    %v331 = vunpack.c.l.b16 %v299
    %v332 = vunpack.c.l.b16 %v300
    %v333 = vunpack.c.l.b16 %v301
    %v334 = vunpack.c.l.b16 %v302
    %v335 = vunpack.c.l.b16 %v303
    %v336 = vunpack.c.l.b16 %v304
    %v337 = vpack.c.b16 %v322, %v321
    %v338 = vpack.c.b16 %v324, %v323
    %v339 = vpack.c.b16 %v326, %v325
    %v340 = vpack.c.b16 %v328, %v327
    %v341 = vpack.c.b16 %v330, %v329
    %v342 = vpack.c.b16 %v332, %v331
    %v343 = vpack.c.b16 %v334, %v333
    %v344 = vpack.c.b16 %v336, %v335
    %353 = vmatprep.subr.bf16.mxu0 0
    %354 = vmatpush1.bf16.msra.mxu0 %v337
    %355 = vmatprep.subr.bf16.mxu0 0
    %356 = vmatpush1.bf16.msra.mxu0 %v338
    %357 = vmatprep.subr.bf16.mxu0 0
    %358 = vmatpush1.bf16.msra.mxu0 %v339
    %359 = vmatprep.subr.bf16.mxu0 0
    %360 = vmatpush1.bf16.msra.mxu0 %v340
    %361 = vmatprep.subr.bf16.mxu0 0
    %362 = vmatpush1.bf16.msra.mxu0 %v341
    %363 = vmatprep.subr.bf16.mxu0 0
    %364 = vmatpush1.bf16.msra.mxu0 %v342
    %365 = vmatprep.subr.bf16.mxu0 0
    %366 = vmatpush1.bf16.msra.mxu0 %v343
    %367 = vmatprep.subr.bf16.mxu0 0
    %368 = vmatpush1.bf16.msra.mxu0 %v344
    %369 = vmatprep.subr.bf16.mxu0 0
    %370 = vmatpush1.bf16.msra.mxu0 0
    %371 = vmatprep.subr.bf16.mxu0 0
    %372 = vmatpush1.bf16.msra.mxu0 0
    %373 = vmatprep.subr.bf16.mxu0 0
    %374 = vmatpush1.bf16.msra.mxu0 0
    %375 = vmatprep.subr.bf16.mxu0 0
    %376 = vmatpush1.bf16.msra.mxu0 0
    %377 = vmatprep.subr.bf16.mxu0 0
    %378 = vmatpush1.bf16.msra.mxu0 0
    %379 = vmatprep.subr.bf16.mxu0 0
    %380 = vmatpush1.bf16.msra.mxu0 0
    %381 = vmatprep.subr.bf16.mxu0 0
    %382 = vmatpush1.bf16.msra.mxu0 0
    %383 = vmatprep.subr.bf16.mxu0 0
    %384 = vmatpush1.bf16.msra.mxu0 0
    %385 = vmatprep.mubr.bf16.mxu0 0
    %386 = vmatmul.mubr.bf16.gmra.mrb[0].mxu0 %v76
    %v387 = vpop.f32.mrb[0].mxu0
    %v388 = vadd.f32 0.0, %v387
    %v389 = vpop.f32.mrb[0].mxu0
    %v390 = vpop.f32.mrb[0].mxu0
    %v391 = vadd.f32 0.0, %v390
    %v392 = vpop.f32.mrb[0].mxu0
    %393 = vdwg.mxu0
    %v394 = vld [vmem:[#allocation7] sm:$0xf]
    %v395 = vld [vmem:[#allocation7 + $0x4] sm:$0xf]
    %v396 = vld [vmem:[#allocation7 + $0x8] sm:$0xf]
    %v397 = vld [vmem:[#allocation7 + $0xc] sm:$0xf]
    %v398 = vpack.c.bf16 %v179, %v176
    %v399 = vpack.c.bf16 %v285, %v282
    %v400 = vpack.c.bf16 %v391, %v388
    %v405 = vunpack.c.l.b16 %v394
    %v406 = vunpack.c.l.b16 %v395
    %v407 = vunpack.c.l.b16 %v396
    %v408 = vunpack.c.l.b16 %v397
    %v409 = vpack.c.b16 %v406, %v405
    %v410 = vpack.c.b16 %v408, %v407
    %vm411 = vcmask 392192
    %v413 = vsel %vm411, %v409, 0
    %v416 = vsel %vm411, %v410, 0
    %418 = vmatprep.subr.bf16.mxu0 0
    %419 = vmatpush1.bf16.msra.mxu0 %v398
    %420 = vmatprep.subr.bf16.mxu0 0
    %421 = vmatpush1.bf16.msra.mxu0 %v399
    %422 = vmatprep.subr.bf16.mxu0 0
    %423 = vmatpush1.bf16.msra.mxu0 %v400
    %424 = vmatprep.subr.bf16.mxu0 0
    %425 = vmatpush1.bf16.msra.mxu0 0
    %426 = vmatprep.subr.bf16.mxu0 0
    %427 = vmatpush1.bf16.msra.mxu0 0
    %428 = vmatprep.subr.bf16.mxu0 0
    %429 = vmatpush1.bf16.msra.mxu0 0
    %430 = vmatprep.subr.bf16.mxu0 0
    %431 = vmatpush1.bf16.msra.mxu0 0
    %432 = vmatprep.subr.bf16.mxu0 0
    %433 = vmatpush1.bf16.msra.mxu0 0
    %434 = vmatprep.subr.bf16.mxu0 0
    %435 = vmatpush1.bf16.msra.mxu0 0
    %436 = vmatprep.subr.bf16.mxu0 0
    %437 = vmatpush1.bf16.msra.mxu0 0
    %438 = vmatprep.subr.bf16.mxu0 0
    %439 = vmatpush1.bf16.msra.mxu0 0
    %440 = vmatprep.subr.bf16.mxu0 0
    %441 = vmatpush1.bf16.msra.mxu0 0
    %442 = vmatprep.subr.bf16.mxu0 0
    %443 = vmatpush1.bf16.msra.mxu0 0
    %444 = vmatprep.subr.bf16.mxu0 0
    %445 = vmatpush1.bf16.msra.mxu0 0
    %446 = vmatprep.subr.bf16.mxu0 0
    %447 = vmatpush1.bf16.msra.mxu0 0
    %448 = vmatprep.subr.bf16.mxu0 0
    %449 = vmatpush1.bf16.msra.mxu0 0
    %450 = vmatprep.mubr.bf16.mxu0 0
    %451 = vmatmul.mubr.bf16.gmra.mrb[0].mxu0 %v413
    %v452 = vpop.f32.mrb[0].mxu0
    %v453 = vadd.f32 0.0, %v452
    %v454 = vpop.f32.mrb[0].mxu0
    %v455 = vpop.f32.mrb[0].mxu0
    %v456 = vadd.f32 0.0, %v455
    %v457 = vpop.f32.mrb[0].mxu0
    %458 = vmatprep.mubr.bf16.mxu0 0
    %459 = vmatmul.mubr.bf16.gmra.mrb[0].mxu0 %v416
    %v460 = vpop.f32.mrb[0].mxu0
    %v461 = vadd.f32 0.0, %v460
    %v462 = vpop.f32.mrb[0].mxu0
    %v463 = vpop.f32.mrb[0].mxu0
    %v464 = vadd.f32 0.0, %v463
    %v465 = vpop.f32.mrb[0].mxu0
    %466 = vdwg.mxu0
    %467 = vadd.xlane.f32.xlu0 %v453
    %v468 = vpop.xlane.xlu0 %467
    %469 = vadd.xlane.f32.xlu0 %v456
    %v470 = vpop.xlane.xlu0 %469
    %471 = vadd.xlane.f32.xlu0 %v461
    %v472 = vpop.xlane.xlu0 %471
    %473 = vadd.xlane.f32.xlu0 %v464
    %v474 = vpop.xlane.xlu0 %473
    %v475 = vmul.f32 %v453, %v453
    %v476 = vmul.f32 %v456, %v456
    %v477 = vmul.f32 %v461, %v461
    %v478 = vmul.f32 %v464, %v464
    %479 = vadd.xlane.f32.xlu0 %v475
    %v480 = vpop.xlane.xlu0 %479
    %481 = vadd.xlane.f32.xlu0 %v476
    %v482 = vpop.xlane.xlu0 %481
    %483 = vadd.xlane.f32.xlu0 %v477
    %v484 = vpop.xlane.xlu0 %483
    %485 = vadd.xlane.f32.xlu0 %v478
    %v486 = vpop.xlane.xlu0 %485
    %v487 = vld [vmem:[#allocation8] sm:$0xff]
    %v488 = vld [vmem:[#allocation8 + $0x8] sm:$0xff]
    %v489 = vld [vmem:[#allocation8 + $0x10] sm:$0xff]
    %v490 = vld [vmem:[#allocation8 + $0x18] sm:$0xff]
    %vm491 = vcmask 261120
    %v493 = vsel %vm491, %v487, 0
    %v496 = vsel %vm491, %v488, 0
    %v499 = vsel %vm491, %v489, 0
    %v502 = vsel %vm491, %v490, 0
    %504 = vmatprep.subr.mxu0 0.0
    %505 = vmatpush1.msra.mxu0 %v468
    %506 = vmatprep.subr.mxu0 0.0
    %507 = vmatpush1.msra.mxu0 %v470
    %508 = vmatprep.subr.mxu0 0.0
    %509 = vmatpush1.msra.mxu0 %v472
    %510 = vmatprep.subr.mxu0 0.0
    %511 = vmatpush1.msra.mxu0 %v474
    %512 = vmatprep.subr.mxu0 0.0
    %513 = vmatpush1.msra.mxu0 0.0
    %514 = vmatprep.subr.mxu0 0.0
    %515 = vmatpush1.msra.mxu0 0.0
    %516 = vmatprep.subr.mxu0 0.0
    %517 = vmatpush1.msra.mxu0 0.0
    %518 = vmatprep.subr.mxu0 0.0
    %519 = vmatpush1.msra.mxu0 0.0
    %520 = vmatprep.subr.mxu0 0.0
    %521 = vmatpush1.msra.mxu0 0.0
    %522 = vmatprep.subr.mxu0 0.0
    %523 = vmatpush1.msra.mxu0 0.0
    %524 = vmatprep.subr.mxu0 0.0
    %525 = vmatpush1.msra.mxu0 0.0
    %526 = vmatprep.subr.mxu0 0.0
    %527 = vmatpush1.msra.mxu0 0.0
    %528 = vmatprep.subr.mxu0 0.0
    %529 = vmatpush1.msra.mxu0 0.0
    %530 = vmatprep.subr.mxu0 0.0
    %531 = vmatpush1.msra.mxu0 0.0
    %532 = vmatprep.subr.mxu0 0.0
    %533 = vmatpush1.msra.mxu0 0.0
    %534 = vmatprep.subr.mxu0 0.0
    %535 = vmatpush1.msra.mxu0 0.0
    %536 = vmatprep.subr.mxu0 0.0
    %537 = vmatpush1.msra.mxu0 0.0
    %538 = vmatprep.subr.mxu0 0.0
    %539 = vmatpush1.msra.mxu0 0.0
    %540 = vmatprep.subr.mxu0 0.0
    %541 = vmatpush1.msra.mxu0 0.0
    %542 = vmatprep.subr.mxu0 0.0
    %543 = vmatpush1.msra.mxu0 0.0
    %544 = vmatprep.subr.mxu0 0.0
    %545 = vmatpush1.msra.mxu0 0.0
    %546 = vmatprep.subr.mxu0 0.0
    %547 = vmatpush1.msra.mxu0 0.0
    %548 = vmatprep.subr.mxu0 0.0
    %549 = vmatpush1.msra.mxu0 0.0
    %550 = vmatprep.subr.mxu0 0.0
    %551 = vmatpush1.msra.mxu0 0.0
    %552 = vmatprep.subr.mxu0 0.0
    %553 = vmatpush1.msra.mxu0 0.0
    %554 = vmatprep.subr.mxu0 0.0
    %555 = vmatpush1.msra.mxu0 0.0
    %556 = vmatprep.subr.mxu0 0.0
    %557 = vmatpush1.msra.mxu0 0.0
    %558 = vmatprep.subr.mxu0 0.0
    %559 = vmatpush1.msra.mxu0 0.0
    %560 = vmatprep.subr.mxu0 0.0
    %561 = vmatpush1.msra.mxu0 0.0
    %562 = vmatprep.subr.mxu0 0.0
    %563 = vmatpush1.msra.mxu0 0.0
    %564 = vmatprep.subr.mxu0 0.0
    %565 = vmatpush1.msra.mxu0 0.0
    %566 = vmatprep.subr.mxu0 0.0
    %567 = vmatpush1.msra.mxu0 0.0
    %568 = vmatprep.mubr.f32.mxu0 0.0
    %569 = vmatmul.mubr.f32.gmra.mrb[0].mxu0 %v493
    %v570 = vpop.f32.mrb[0].mxu0
    %v571 = vadd.f32 0.0, %v570
    %v572 = vpop.f32.mrb[0].mxu0
    %573 = vmatprep.mubr.f32.mxu0 0.0
    %574 = vmatmul.mubr.f32.gmra.mrb[0].mxu0 %v496
    %v575 = vpop.f32.mrb[0].mxu0
    %v576 = vadd.f32 0.0, %v575
    %v577 = vpop.f32.mrb[0].mxu0
    %578 = vmatprep.mubr.f32.mxu0 0.0
    %579 = vmatmul.mubr.f32.gmra.mrb[0].mxu0 %v499
    %v580 = vpop.f32.mrb[0].mxu0
    %v581 = vadd.f32 0.0, %v580
    %v582 = vpop.f32.mrb[0].mxu0
    %583 = vmatprep.mubr.f32.mxu0 0.0
    %584 = vmatmul.mubr.f32.gmra.mrb[0].mxu0 %v502
    %v585 = vpop.f32.mrb[0].mxu0
    %v586 = vadd.f32 0.0, %v585
    %v587 = vpop.f32.mrb[0].mxu0
    %588 = vdwg.mxu0
    %589 = vmatprep.subr.mxu0 0.0
    %590 = vmatpush1.msra.mxu0 %v480
    %591 = vmatprep.subr.mxu0 0.0
    %592 = vmatpush1.msra.mxu0 %v482
    %593 = vmatprep.subr.mxu0 0.0
    %594 = vmatpush1.msra.mxu0 %v484
    %595 = vmatprep.subr.mxu0 0.0
    %596 = vmatpush1.msra.mxu0 %v486
    %597 = vmatprep.subr.mxu0 0.0
    %598 = vmatpush1.msra.mxu0 0.0
    %599 = vmatprep.subr.mxu0 0.0
    %600 = vmatpush1.msra.mxu0 0.0
    %601 = vmatprep.subr.mxu0 0.0
    %602 = vmatpush1.msra.mxu0 0.0
    %603 = vmatprep.subr.mxu0 0.0
    %604 = vmatpush1.msra.mxu0 0.0
    %605 = vmatprep.subr.mxu0 0.0
    %606 = vmatpush1.msra.mxu0 0.0
    %607 = vmatprep.subr.mxu0 0.0
    %608 = vmatpush1.msra.mxu0 0.0
    %609 = vmatprep.subr.mxu0 0.0
    %610 = vmatpush1.msra.mxu0 0.0
    %611 = vmatprep.subr.mxu0 0.0
    %612 = vmatpush1.msra.mxu0 0.0
    %613 = vmatprep.subr.mxu0 0.0
    %614 = vmatpush1.msra.mxu0 0.0
    %615 = vmatprep.subr.mxu0 0.0
    %616 = vmatpush1.msra.mxu0 0.0
    %617 = vmatprep.subr.mxu0 0.0
    %618 = vmatpush1.msra.mxu0 0.0
    %619 = vmatprep.subr.mxu0 0.0
    %620 = vmatpush1.msra.mxu0 0.0
    %621 = vmatprep.subr.mxu0 0.0
    %622 = vmatpush1.msra.mxu0 0.0
    %623 = vmatprep.subr.mxu0 0.0
    %624 = vmatpush1.msra.mxu0 0.0
    %625 = vmatprep.subr.mxu0 0.0
    %626 = vmatpush1.msra.mxu0 0.0
    %627 = vmatprep.subr.mxu0 0.0
    %628 = vmatpush1.msra.mxu0 0.0
    %629 = vmatprep.subr.mxu0 0.0
    %630 = vmatpush1.msra.mxu0 0.0
    %631 = vmatprep.subr.mxu0 0.0
    %632 = vmatpush1.msra.mxu0 0.0
    %633 = vmatprep.subr.mxu0 0.0
    %634 = vmatpush1.msra.mxu0 0.0
    %635 = vmatprep.subr.mxu0 0.0
    %636 = vmatpush1.msra.mxu0 0.0
    %637 = vmatprep.subr.mxu0 0.0
    %638 = vmatpush1.msra.mxu0 0.0
    %639 = vmatprep.subr.mxu0 0.0
    %640 = vmatpush1.msra.mxu0 0.0
    %641 = vmatprep.subr.mxu0 0.0
    %642 = vmatpush1.msra.mxu0 0.0
    %643 = vmatprep.subr.mxu0 0.0
    %644 = vmatpush1.msra.mxu0 0.0
    %645 = vmatprep.subr.mxu0 0.0
    %646 = vmatpush1.msra.mxu0 0.0
    %647 = vmatprep.subr.mxu0 0.0
    %648 = vmatpush1.msra.mxu0 0.0
    %649 = vmatprep.subr.mxu0 0.0
    %650 = vmatpush1.msra.mxu0 0.0
    %651 = vmatprep.subr.mxu0 0.0
    %652 = vmatpush1.msra.mxu0 0.0
    %653 = vmatprep.mubr.f32.mxu0 0.0
    %654 = vmatmul.mubr.f32.gmra.mrb[0].mxu0 %v493
    %v655 = vpop.f32.mrb[0].mxu0
    %v656 = vadd.f32 0.0, %v655
    %v657 = vpop.f32.mrb[0].mxu0
    %658 = vmatprep.mubr.f32.mxu0 0.0
    %659 = vmatmul.mubr.f32.gmra.mrb[0].mxu0 %v496
    %v660 = vpop.f32.mrb[0].mxu0
    %v661 = vadd.f32 0.0, %v660
    %v662 = vpop.f32.mrb[0].mxu0
    %663 = vmatprep.mubr.f32.mxu0 0.0
    %664 = vmatmul.mubr.f32.gmra.mrb[0].mxu0 %v499
    %v665 = vpop.f32.mrb[0].mxu0
    %v666 = vadd.f32 0.0, %v665
    %v667 = vpop.f32.mrb[0].mxu0
    %668 = vmatprep.mubr.f32.mxu0 0.0
    %669 = vmatmul.mubr.f32.gmra.mrb[0].mxu0 %v502
    %v670 = vpop.f32.mrb[0].mxu0
    %v671 = vadd.f32 0.0, %v670
    %v672 = vpop.f32.mrb[0].mxu0
    %673 = vdwg.mxu0
    %v674 = vmul.f32 %v571, %v571
    %v675 = vmul.f32 %v576, %v576
    %v676 = vmul.f32 %v581, %v581
    %v677 = vmul.f32 %v586, %v586
    %v678 = vsub.f32 %v656, %v674
    %v679 = vsub.f32 %v661, %v675
    %v680 = vsub.f32 %v666, %v676
    %v681 = vsub.f32 %v671, %v677
    %v682 = vmax.f32 %v678, 0.0
    %v683 = vmax.f32 %v679, 0.0
    %v684 = vmax.f32 %v680, 0.0
    %v685 = vmax.f32 %v681, 0.0
    %v686 = vadd.f32 %v682, 1e-05
    %v687 = vadd.f32 %v683, 1e-05
    %v688 = vadd.f32 %v684, 1e-05
    %v689 = vadd.f32 %v685, 1e-05
    %v690 = vrsqrt.pop %v686
    %v691 = vrsqrt.pop %v687
    %v692 = vrsqrt.pop %v688
    %v693 = vrsqrt.pop %v689
    %694 = vrot.lane.b32.xlu0 %v487, 96
    %v695 = vpop.permute.xlu0 %694
    %696 = vrot.lane.b32.xlu0 %v488, 96
    %v697 = vpop.permute.xlu0 %696
    %698 = vrot.lane.b32.xlu0 %v489, 96
    %v699 = vpop.permute.xlu0 %698
    %700 = vrot.lane.b32.xlu0 %v490, 96
    %v701 = vpop.permute.xlu0 %700
    %v706 = vmul.f32 %v690, %v695
    %v707 = vmul.f32 %v691, %v697
    %v708 = vmul.f32 %v692, %v699
    %v709 = vmul.f32 %v693, %v701
    %v710 = vmul.f32 %v571, %v706
    %v711 = vmul.f32 %v576, %v707
    %v712 = vmul.f32 %v581, %v708
    %v713 = vmul.f32 %v586, %v709
    %718 = vrot.lane.b32.xlu0 %v710, 33
    %v719 = vpop.permute.xlu0 %718
    %720 = vrot.lane.b32.xlu0 %v711, 33
    %v721 = vpop.permute.xlu0 %720
    %722 = vrot.lane.b32.xlu0 %v712, 33
    %v723 = vpop.permute.xlu0 %722
    %724 = vrot.lane.b32.xlu0 %v713, 33
    %v725 = vpop.permute.xlu0 %724
    %v730 = vsub.f32 %v487, %v719
    %v731 = vsub.f32 %v488, %v721
    %v732 = vsub.f32 %v489, %v723
    %v733 = vsub.f32 %v490, %v725
    %735 = vset.pattern.permute.xlu0 0
    %736 = vperm.xlu0 %735, %v706
    %v737 = vpop.permute.xlu0 %736
    %740 = vset.pattern.permute.xlu0 0
    %741 = vperm.xlu0 %740, %v707
    %v742 = vpop.permute.xlu0 %741
    %745 = vset.pattern.permute.xlu0 0
    %746 = vperm.xlu0 %745, %v708
    %v747 = vpop.permute.xlu0 %746
    %750 = vset.pattern.permute.xlu0 0
    %751 = vperm.xlu0 %750, %v709
    %v752 = vpop.permute.xlu0 %751
    %v754 = vmul.f32 %v453, %v737
    %v755 = vmul.f32 %v456, %v742
    %v756 = vmul.f32 %v461, %v747
    %v757 = vmul.f32 %v464, %v752
    %759 = vset.pattern.permute.xlu0 33
    %760 = vperm.xlu0 %759, %v730
    %v761 = vpop.permute.xlu0 %760
    %764 = vset.pattern.permute.xlu0 33
    %765 = vperm.xlu0 %764, %v731
    %v766 = vpop.permute.xlu0 %765
    %769 = vset.pattern.permute.xlu0 33
    %770 = vperm.xlu0 %769, %v732
    %v771 = vpop.permute.xlu0 %770
    %774 = vset.pattern.permute.xlu0 33
    %775 = vperm.xlu0 %774, %v733
    %v776 = vpop.permute.xlu0 %775
    %v778 = vadd.f32 %v754, %v761
    %v779 = vadd.f32 %v755, %v766
    %v780 = vadd.f32 %v756, %v771
    %v781 = vadd.f32 %v757, %v776
    %vm782 = vcmp.gt.f32.partialorder %v778, 0.0
    %vm783 = vcmp.gt.f32.partialorder %v779, 0.0
    %vm784 = vcmp.gt.f32.partialorder %v780, 0.0
    %vm785 = vcmp.gt.f32.partialorder %v781, 0.0
    %v786 = vmul.f32 %v778, 0.2
    %v787 = vmul.f32 %v779, 0.2
    %v788 = vmul.f32 %v780, 0.2
    %v789 = vmul.f32 %v781, 0.2
    %v790 = vsel %vm782, %v778, %v786
    %v791 = vsel %vm783, %v779, %v787
    %v792 = vsel %vm784, %v780, %v788
    %v793 = vsel %vm785, %v781, %v789
    %v794 = vpack.c.bf16 %v791, %v790
    %v795 = vpack.c.bf16 %v793, %v792
    %s796 = scalar_lea.vmem [#allocation5], 192
    %v797 = vld [vmem:[%s796] sm:$0xf]
    %v798 = vld [vmem:[%s796 + $0x4] sm:$0xf]
    %v799 = vld [vmem:[%s796 + $0x8] sm:$0xf]
    %v800 = vld [vmem:[%s796 + $0xc] sm:$0xf]
    %v801 = vld [vmem:[%s796 + $0x10] sm:$0xf]
    %v802 = vld [vmem:[%s796 + $0x14] sm:$0xf]
    %v803 = vld [vmem:[%s796 + $0x18] sm:$0xf]
    %v804 = vld [vmem:[%s796 + $0x1c] sm:$0xf]
    %v805 = vld [vmem:[%s796 + $0x20] sm:$0xf]
    %v806 = vld [vmem:[%s796 + $0x24] sm:$0xf]
    %v807 = vld [vmem:[%s796 + $0x28] sm:$0xf]
    %v808 = vld [vmem:[%s796 + $0x2c] sm:$0xf]
    %v809 = vld [vmem:[%s796 + $0x30] sm:$0xf]
    %v810 = vld [vmem:[%s796 + $0x34] sm:$0xf]
    %v811 = vld [vmem:[%s796 + $0x38] sm:$0xf]
    %v812 = vld [vmem:[%s796 + $0x3c] sm:$0xf]
    %v829 = vunpack.c.l.b16 %v797
    %v830 = vunpack.c.l.b16 %v798
    %v831 = vunpack.c.l.b16 %v799
    %v832 = vunpack.c.l.b16 %v800
    %v833 = vunpack.c.l.b16 %v801
    %v834 = vunpack.c.l.b16 %v802
    %v835 = vunpack.c.l.b16 %v803
    %v836 = vunpack.c.l.b16 %v804
    %v837 = vunpack.c.l.b16 %v805
    %v838 = vunpack.c.l.b16 %v806
    %v839 = vunpack.c.l.b16 %v807
    %v840 = vunpack.c.l.b16 %v808
    %v841 = vunpack.c.l.b16 %v809
    %v842 = vunpack.c.l.b16 %v810
    %v843 = vunpack.c.l.b16 %v811
    %v844 = vunpack.c.l.b16 %v812
    %v845 = vpack.c.b16 %v830, %v829
    %v846 = vpack.c.b16 %v832, %v831
    %v847 = vpack.c.b16 %v834, %v833
    %v848 = vpack.c.b16 %v836, %v835
    %v849 = vpack.c.b16 %v838, %v837
    %v850 = vpack.c.b16 %v840, %v839
    %v851 = vpack.c.b16 %v842, %v841
    %v852 = vpack.c.b16 %v844, %v843
    %861 = vmatprep.subr.bf16.mxu0 0
    %862 = vmatpush1.bf16.msra.mxu0 %v845
    %863 = vmatprep.subr.bf16.mxu0 0
    %864 = vmatpush1.bf16.msra.mxu0 %v846
    %865 = vmatprep.subr.bf16.mxu0 0
    %866 = vmatpush1.bf16.msra.mxu0 %v847
    %867 = vmatprep.subr.bf16.mxu0 0
    %868 = vmatpush1.bf16.msra.mxu0 %v848
    %869 = vmatprep.subr.bf16.mxu0 0
    %870 = vmatpush1.bf16.msra.mxu0 %v849
    %871 = vmatprep.subr.bf16.mxu0 0
    %872 = vmatpush1.bf16.msra.mxu0 %v850
    %873 = vmatprep.subr.bf16.mxu0 0
    %874 = vmatpush1.bf16.msra.mxu0 %v851
    %875 = vmatprep.subr.bf16.mxu0 0
    %876 = vmatpush1.bf16.msra.mxu0 %v852
    %877 = vmatprep.subr.bf16.mxu0 0
    %878 = vmatpush1.bf16.msra.mxu0 0
    %879 = vmatprep.subr.bf16.mxu0 0
    %880 = vmatpush1.bf16.msra.mxu0 0
    %881 = vmatprep.subr.bf16.mxu0 0
    %882 = vmatpush1.bf16.msra.mxu0 0
    %883 = vmatprep.subr.bf16.mxu0 0
    %884 = vmatpush1.bf16.msra.mxu0 0
    %885 = vmatprep.subr.bf16.mxu0 0
    %886 = vmatpush1.bf16.msra.mxu0 0
    %887 = vmatprep.subr.bf16.mxu0 0
    %888 = vmatpush1.bf16.msra.mxu0 0
    %889 = vmatprep.subr.bf16.mxu0 0
    %890 = vmatpush1.bf16.msra.mxu0 0
    %891 = vmatprep.subr.bf16.mxu0 0
    %892 = vmatpush1.bf16.msra.mxu0 0
    %893 = vmatprep.mubr.bf16.mxu0 0
    %894 = vmatmul.mubr.bf16.gmra.mrb[0].mxu0 %v794
    %v895 = vpop.f32.mrb[0].mxu0
    %v896 = vadd.f32 0.0, %v895
    %v897 = vpop.f32.mrb[0].mxu0
    %v898 = vpop.f32.mrb[0].mxu0
    %v899 = vadd.f32 0.0, %v898
    %v900 = vpop.f32.mrb[0].mxu0
    %901 = vmatprep.mubr.bf16.mxu0 0
    %902 = vmatmul.mubr.bf16.gmra.mrb[0].mxu0 %v795
    %v903 = vpop.f32.mrb[0].mxu0
    %v904 = vadd.f32 0.0, %v903
    %v905 = vpop.f32.mrb[0].mxu0
    %v906 = vpop.f32.mrb[0].mxu0
    %v907 = vadd.f32 0.0, %v906
    %v908 = vpop.f32.mrb[0].mxu0
    %909 = vdwg.mxu0
    %s910 = scalar_lea.vmem [#allocation5], 256
    %v911 = vld [vmem:[%s910] sm:$0xf]
    %v912 = vld [vmem:[%s910 + $0x4] sm:$0xf]
    %v913 = vld [vmem:[%s910 + $0x8] sm:$0xf]
    %v914 = vld [vmem:[%s910 + $0xc] sm:$0xf]
    %v915 = vld [vmem:[%s910 + $0x10] sm:$0xf]
    %v916 = vld [vmem:[%s910 + $0x14] sm:$0xf]
    %v917 = vld [vmem:[%s910 + $0x18] sm:$0xf]
    %v918 = vld [vmem:[%s910 + $0x1c] sm:$0xf]
    %v919 = vld [vmem:[%s910 + $0x20] sm:$0xf]
    %v920 = vld [vmem:[%s910 + $0x24] sm:$0xf]
    %v921 = vld [vmem:[%s910 + $0x28] sm:$0xf]
    %v922 = vld [vmem:[%s910 + $0x2c] sm:$0xf]
    %v923 = vld [vmem:[%s910 + $0x30] sm:$0xf]
    %v924 = vld [vmem:[%s910 + $0x34] sm:$0xf]
    %v925 = vld [vmem:[%s910 + $0x38] sm:$0xf]
    %v926 = vld [vmem:[%s910 + $0x3c] sm:$0xf]
    %v943 = vunpack.c.l.b16 %v911
    %v944 = vunpack.c.l.b16 %v912
    %v945 = vunpack.c.l.b16 %v913
    %v946 = vunpack.c.l.b16 %v914
    %v947 = vunpack.c.l.b16 %v915
    %v948 = vunpack.c.l.b16 %v916
    %v949 = vunpack.c.l.b16 %v917
    %v950 = vunpack.c.l.b16 %v918
    %v951 = vunpack.c.l.b16 %v919
    %v952 = vunpack.c.l.b16 %v920
    %v953 = vunpack.c.l.b16 %v921
    %v954 = vunpack.c.l.b16 %v922
    %v955 = vunpack.c.l.b16 %v923
    %v956 = vunpack.c.l.b16 %v924
    %v957 = vunpack.c.l.b16 %v925
    %v958 = vunpack.c.l.b16 %v926
    %v959 = vpack.c.b16 %v944, %v943
    %v960 = vpack.c.b16 %v946, %v945
    %v961 = vpack.c.b16 %v948, %v947
    %v962 = vpack.c.b16 %v950, %v949
    %v963 = vpack.c.b16 %v952, %v951
    %v964 = vpack.c.b16 %v954, %v953
    %v965 = vpack.c.b16 %v956, %v955
    %v966 = vpack.c.b16 %v958, %v957
    %975 = vmatprep.subr.bf16.mxu0 0
    %976 = vmatpush1.bf16.msra.mxu0 %v959
    %977 = vmatprep.subr.bf16.mxu0 0
    %978 = vmatpush1.bf16.msra.mxu0 %v960
    %979 = vmatprep.subr.bf16.mxu0 0
    %980 = vmatpush1.bf16.msra.mxu0 %v961
    %981 = vmatprep.subr.bf16.mxu0 0
    %982 = vmatpush1.bf16.msra.mxu0 %v962
    %983 = vmatprep.subr.bf16.mxu0 0
    %984 = vmatpush1.bf16.msra.mxu0 %v963
    %985 = vmatprep.subr.bf16.mxu0 0
    %986 = vmatpush1.bf16.msra.mxu0 %v964
    %987 = vmatprep.subr.bf16.mxu0 0
    %988 = vmatpush1.bf16.msra.mxu0 %v965
    %989 = vmatprep.subr.bf16.mxu0 0
    %990 = vmatpush1.bf16.msra.mxu0 %v966
    %991 = vmatprep.subr.bf16.mxu0 0
    %992 = vmatpush1.bf16.msra.mxu0 0
    %993 = vmatprep.subr.bf16.mxu0 0
    %994 = vmatpush1.bf16.msra.mxu0 0
    %995 = vmatprep.subr.bf16.mxu0 0
    %996 = vmatpush1.bf16.msra.mxu0 0
    %997 = vmatprep.subr.bf16.mxu0 0
    %998 = vmatpush1.bf16.msra.mxu0 0
    %999 = vmatprep.subr.bf16.mxu0 0
    %1000 = vmatpush1.bf16.msra.mxu0 0
    %1001 = vmatprep.subr.bf16.mxu0 0
    %1002 = vmatpush1.bf16.msra.mxu0 0
    %1003 = vmatprep.subr.bf16.mxu0 0
    %1004 = vmatpush1.bf16.msra.mxu0 0
    %1005 = vmatprep.subr.bf16.mxu0 0
    %1006 = vmatpush1.bf16.msra.mxu0 0
    %1007 = vmatprep.mubr.bf16.mxu0 0
    %1008 = vmatmul.mubr.bf16.gmra.mrb[0].mxu0 %v794
    %v1009 = vpop.f32.mrb[0].mxu0
    %v1010 = vadd.f32 0.0, %v1009
    %v1011 = vpop.f32.mrb[0].mxu0
    %v1012 = vpop.f32.mrb[0].mxu0
    %v1013 = vadd.f32 0.0, %v1012
    %v1014 = vpop.f32.mrb[0].mxu0
    %1015 = vmatprep.mubr.bf16.mxu0 0
    %1016 = vmatmul.mubr.bf16.gmra.mrb[0].mxu0 %v795
    %v1017 = vpop.f32.mrb[0].mxu0
    %v1018 = vadd.f32 0.0, %v1017
    %v1019 = vpop.f32.mrb[0].mxu0
    %v1020 = vpop.f32.mrb[0].mxu0
    %v1021 = vadd.f32 0.0, %v1020
    %v1022 = vpop.f32.mrb[0].mxu0
    %1023 = vdwg.mxu0
    %s1024 = scalar_lea.vmem [#allocation5], 320
    %v1025 = vld [vmem:[%s1024] sm:$0xf]
    %v1026 = vld [vmem:[%s1024 + $0x4] sm:$0xf]
    %v1027 = vld [vmem:[%s1024 + $0x8] sm:$0xf]
    %v1028 = vld [vmem:[%s1024 + $0xc] sm:$0xf]
    %v1029 = vld [vmem:[%s1024 + $0x10] sm:$0xf]
    %v1030 = vld [vmem:[%s1024 + $0x14] sm:$0xf]
    %v1031 = vld [vmem:[%s1024 + $0x18] sm:$0xf]
    %v1032 = vld [vmem:[%s1024 + $0x1c] sm:$0xf]
    %v1033 = vld [vmem:[%s1024 + $0x20] sm:$0xf]
    %v1034 = vld [vmem:[%s1024 + $0x24] sm:$0xf]
    %v1035 = vld [vmem:[%s1024 + $0x28] sm:$0xf]
    %v1036 = vld [vmem:[%s1024 + $0x2c] sm:$0xf]
    %v1037 = vld [vmem:[%s1024 + $0x30] sm:$0xf]
    %v1038 = vld [vmem:[%s1024 + $0x34] sm:$0xf]
    %v1039 = vld [vmem:[%s1024 + $0x38] sm:$0xf]
    %v1040 = vld [vmem:[%s1024 + $0x3c] sm:$0xf]
    %v1057 = vunpack.c.l.b16 %v1025
    %v1058 = vunpack.c.l.b16 %v1026
    %v1059 = vunpack.c.l.b16 %v1027
    %v1060 = vunpack.c.l.b16 %v1028
    %v1061 = vunpack.c.l.b16 %v1029
    %v1062 = vunpack.c.l.b16 %v1030
    %v1063 = vunpack.c.l.b16 %v1031
    %v1064 = vunpack.c.l.b16 %v1032
    %v1065 = vunpack.c.l.b16 %v1033
    %v1066 = vunpack.c.l.b16 %v1034
    %v1067 = vunpack.c.l.b16 %v1035
    %v1068 = vunpack.c.l.b16 %v1036
    %v1069 = vunpack.c.l.b16 %v1037
    %v1070 = vunpack.c.l.b16 %v1038
    %v1071 = vunpack.c.l.b16 %v1039
    %v1072 = vunpack.c.l.b16 %v1040
    %v1073 = vpack.c.b16 %v1058, %v1057
    %v1074 = vpack.c.b16 %v1060, %v1059
    %v1075 = vpack.c.b16 %v1062, %v1061
    %v1076 = vpack.c.b16 %v1064, %v1063
    %v1077 = vpack.c.b16 %v1066, %v1065
    %v1078 = vpack.c.b16 %v1068, %v1067
    %v1079 = vpack.c.b16 %v1070, %v1069
    %v1080 = vpack.c.b16 %v1072, %v1071
    %1089 = vmatprep.subr.bf16.mxu0 0
    %1090 = vmatpush1.bf16.msra.mxu0 %v1073
    %1091 = vmatprep.subr.bf16.mxu0 0
    %1092 = vmatpush1.bf16.msra.mxu0 %v1074
    %1093 = vmatprep.subr.bf16.mxu0 0
    %1094 = vmatpush1.bf16.msra.mxu0 %v1075
    %1095 = vmatprep.subr.bf16.mxu0 0
    %1096 = vmatpush1.bf16.msra.mxu0 %v1076
    %1097 = vmatprep.subr.bf16.mxu0 0
    %1098 = vmatpush1.bf16.msra.mxu0 %v1077
    %1099 = vmatprep.subr.bf16.mxu0 0
    %1100 = vmatpush1.bf16.msra.mxu0 %v1078
    %1101 = vmatprep.subr.bf16.mxu0 0
    %1102 = vmatpush1.bf16.msra.mxu0 %v1079
    %1103 = vmatprep.subr.bf16.mxu0 0
    %1104 = vmatpush1.bf16.msra.mxu0 %v1080
    %1105 = vmatprep.subr.bf16.mxu0 0
    %1106 = vmatpush1.bf16.msra.mxu0 0
    %1107 = vmatprep.subr.bf16.mxu0 0
    %1108 = vmatpush1.bf16.msra.mxu0 0
    %1109 = vmatprep.subr.bf16.mxu0 0
    %1110 = vmatpush1.bf16.msra.mxu0 0
    %1111 = vmatprep.subr.bf16.mxu0 0
    %1112 = vmatpush1.bf16.msra.mxu0 0
    %1113 = vmatprep.subr.bf16.mxu0 0
    %1114 = vmatpush1.bf16.msra.mxu0 0
    %1115 = vmatprep.subr.bf16.mxu0 0
    %1116 = vmatpush1.bf16.msra.mxu0 0
    %1117 = vmatprep.subr.bf16.mxu0 0
    %1118 = vmatpush1.bf16.msra.mxu0 0
    %1119 = vmatprep.subr.bf16.mxu0 0
    %1120 = vmatpush1.bf16.msra.mxu0 0
    %1121 = vmatprep.mubr.bf16.mxu0 0
    %1122 = vmatmul.mubr.bf16.gmra.mrb[0].mxu0 %v794
    %v1123 = vpop.f32.mrb[0].mxu0
    %v1124 = vadd.f32 0.0, %v1123
    %v1125 = vpop.f32.mrb[0].mxu0
    %v1126 = vpop.f32.mrb[0].mxu0
    %v1127 = vadd.f32 0.0, %v1126
    %v1128 = vpop.f32.mrb[0].mxu0
    %1129 = vmatprep.mubr.bf16.mxu0 0
    %1130 = vmatmul.mubr.bf16.gmra.mrb[0].mxu0 %v795
    %v1131 = vpop.f32.mrb[0].mxu0
    %v1132 = vadd.f32 0.0, %v1131
    %v1133 = vpop.f32.mrb[0].mxu0
    %v1134 = vpop.f32.mrb[0].mxu0
    %v1135 = vadd.f32 0.0, %v1134
    %v1136 = vpop.f32.mrb[0].mxu0
    %1137 = vdwg.mxu0
    %s1138 = scalar_lea.vmem [#allocation7], 16
    %v1139 = vld [vmem:[%s1138] sm:$0xf]
    %v1140 = vld [vmem:[%s1138 + $0x4] sm:$0xf]
    %v1141 = vld [vmem:[%s1138 + $0x8] sm:$0xf]
    %v1142 = vld [vmem:[%s1138 + $0xc] sm:$0xf]
    %v1143 = vpack.c.bf16 %v899, %v896
    %v1144 = vpack.c.bf16 %v907, %v904
    %v1145 = vpack.c.bf16 %v1013, %v1010
    %v1146 = vpack.c.bf16 %v1021, %v1018
    %v1147 = vpack.c.bf16 %v1127, %v1124
    %v1148 = vpack.c.bf16 %v1135, %v1132
    %v1153 = vunpack.c.l.b16 %v1139
    %v1154 = vunpack.c.l.b16 %v1140
    %v1155 = vunpack.c.l.b16 %v1141
    %v1156 = vunpack.c.l.b16 %v1142
    %v1157 = vpack.c.b16 %v1154, %v1153
    %v1158 = vpack.c.b16 %v1156, %v1155
    %vm1159 = vcmask 785408
    %v1161 = vsel %vm1159, %v1157, 0
    %v1164 = vsel %vm1159, %v1158, 0
    %1166 = vmatprep.subr.bf16.mxu0 0
    %1167 = vmatpush1.bf16.msra.mxu0 %v1143
    %1168 = vmatprep.subr.bf16.mxu0 0
    %1169 = vmatpush1.bf16.msra.mxu0 %v1144
    %1170 = vmatprep.subr.bf16.mxu0 0
    %1171 = vmatpush1.bf16.msra.mxu0 %v1145
    %1172 = vmatprep.subr.bf16.mxu0 0
    %1173 = vmatpush1.bf16.msra.mxu0 %v1146
    %1174 = vmatprep.subr.bf16.mxu0 0
    %1175 = vmatpush1.bf16.msra.mxu0 %v1147
    %1176 = vmatprep.subr.bf16.mxu0 0
    %1177 = vmatpush1.bf16.msra.mxu0 %v1148
    %1178 = vmatprep.subr.bf16.mxu0 0
    %1179 = vmatpush1.bf16.msra.mxu0 0
    %1180 = vmatprep.subr.bf16.mxu0 0
    %1181 = vmatpush1.bf16.msra.mxu0 0
    %1182 = vmatprep.subr.bf16.mxu0 0
    %1183 = vmatpush1.bf16.msra.mxu0 0
    %1184 = vmatprep.subr.bf16.mxu0 0
    %1185 = vmatpush1.bf16.msra.mxu0 0
    %1186 = vmatprep.subr.bf16.mxu0 0
    %1187 = vmatpush1.bf16.msra.mxu0 0
    %1188 = vmatprep.subr.bf16.mxu0 0
    %1189 = vmatpush1.bf16.msra.mxu0 0
    %1190 = vmatprep.subr.bf16.mxu0 0
    %1191 = vmatpush1.bf16.msra.mxu0 0
    %1192 = vmatprep.subr.bf16.mxu0 0
    %1193 = vmatpush1.bf16.msra.mxu0 0
    %1194 = vmatprep.subr.bf16.mxu0 0
    %1195 = vmatpush1.bf16.msra.mxu0 0
    %1196 = vmatprep.subr.bf16.mxu0 0
    %1197 = vmatpush1.bf16.msra.mxu0 0
    %1198 = vmatprep.mubr.bf16.mxu0 0
    %1199 = vmatmul.mubr.bf16.gmra.mrb[0].mxu0 %v1161
    %v1200 = vpop.f32.mrb[0].mxu0
    %v1201 = vadd.f32 0.0, %v1200
    %v1202 = vpop.f32.mrb[0].mxu0
    %v1203 = vpop.f32.mrb[0].mxu0
    %v1204 = vadd.f32 0.0, %v1203
    %v1205 = vpop.f32.mrb[0].mxu0
    %1206 = vmatprep.mubr.bf16.mxu0 0
    %1207 = vmatmul.mubr.bf16.gmra.mrb[0].mxu0 %v1164
    %v1208 = vpop.f32.mrb[0].mxu0
    %v1209 = vadd.f32 0.0, %v1208
    %v1210 = vpop.f32.mrb[0].mxu0
    %v1211 = vpop.f32.mrb[0].mxu0
    %v1212 = vadd.f32 0.0, %v1211
    %v1213 = vpop.f32.mrb[0].mxu0
    %1214 = vdwg.mxu0
    %1215 = vadd.xlane.f32.xlu0 %v1201
    %v1216 = vpop.xlane.xlu0 %1215
    %1217 = vadd.xlane.f32.xlu0 %v1204
    %v1218 = vpop.xlane.xlu0 %1217
    %1219 = vadd.xlane.f32.xlu0 %v1209
    %v1220 = vpop.xlane.xlu0 %1219
    %1221 = vadd.xlane.f32.xlu0 %v1212
    %v1222 = vpop.xlane.xlu0 %1221
    %v1223 = vmul.f32 %v1201, %v1201
    %v1224 = vmul.f32 %v1204, %v1204
    %v1225 = vmul.f32 %v1209, %v1209
    %v1226 = vmul.f32 %v1212, %v1212
    %1227 = vadd.xlane.f32.xlu0 %v1223
    %v1228 = vpop.xlane.xlu0 %1227
    %1229 = vadd.xlane.f32.xlu0 %v1224
    %v1230 = vpop.xlane.xlu0 %1229
    %1231 = vadd.xlane.f32.xlu0 %v1225
    %v1232 = vpop.xlane.xlu0 %1231
    %1233 = vadd.xlane.f32.xlu0 %v1226
    %v1234 = vpop.xlane.xlu0 %1233
    %s1235 = scalar_lea.vmem [#allocation8], 32
    %v1236 = vld [vmem:[%s1235] sm:$0xff]
    %v1237 = vld [vmem:[%s1235 + $0x8] sm:$0xff]
    %v1238 = vld [vmem:[%s1235 + $0x10] sm:$0xff]
    %v1239 = vld [vmem:[%s1235 + $0x18] sm:$0xff]
    %v1241 = vsel %vm491, %v1236, 0
    %v1244 = vsel %vm491, %v1237, 0
    %v1247 = vsel %vm491, %v1238, 0
    %v1250 = vsel %vm491, %v1239, 0
    %1252 = vmatprep.subr.mxu0 0.0
    %1253 = vmatpush1.msra.mxu0 %v1216
    %1254 = vmatprep.subr.mxu0 0.0
    %1255 = vmatpush1.msra.mxu0 %v1218
    %1256 = vmatprep.subr.mxu0 0.0
    %1257 = vmatpush1.msra.mxu0 %v1220
    %1258 = vmatprep.subr.mxu0 0.0
    %1259 = vmatpush1.msra.mxu0 %v1222
    %1260 = vmatprep.subr.mxu0 0.0
    %1261 = vmatpush1.msra.mxu0 0.0
    %1262 = vmatprep.subr.mxu0 0.0
    %1263 = vmatpush1.msra.mxu0 0.0
    %1264 = vmatprep.subr.mxu0 0.0
    %1265 = vmatpush1.msra.mxu0 0.0
    %1266 = vmatprep.subr.mxu0 0.0
    %1267 = vmatpush1.msra.mxu0 0.0
    %1268 = vmatprep.subr.mxu0 0.0
    %1269 = vmatpush1.msra.mxu0 0.0
    %1270 = vmatprep.subr.mxu0 0.0
    %1271 = vmatpush1.msra.mxu0 0.0
    %1272 = vmatprep.subr.mxu0 0.0
    %1273 = vmatpush1.msra.mxu0 0.0
    %1274 = vmatprep.subr.mxu0 0.0
    %1275 = vmatpush1.msra.mxu0 0.0
    %1276 = vmatprep.subr.mxu0 0.0
    %1277 = vmatpush1.msra.mxu0 0.0
    %1278 = vmatprep.subr.mxu0 0.0
    %1279 = vmatpush1.msra.mxu0 0.0
    %1280 = vmatprep.subr.mxu0 0.0
    %1281 = vmatpush1.msra.mxu0 0.0
    %1282 = vmatprep.subr.mxu0 0.0
    %1283 = vmatpush1.msra.mxu0 0.0
    %1284 = vmatprep.subr.mxu0 0.0
    %1285 = vmatpush1.msra.mxu0 0.0
    %1286 = vmatprep.subr.mxu0 0.0
    %1287 = vmatpush1.msra.mxu0 0.0
    %1288 = vmatprep.subr.mxu0 0.0
    %1289 = vmatpush1.msra.mxu0 0.0
    %1290 = vmatprep.subr.mxu0 0.0
    %1291 = vmatpush1.msra.mxu0 0.0
    %1292 = vmatprep.subr.mxu0 0.0
    %1293 = vmatpush1.msra.mxu0 0.0
    %1294 = vmatprep.subr.mxu0 0.0
    %1295 = vmatpush1.msra.mxu0 0.0
    %1296 = vmatprep.subr.mxu0 0.0
    %1297 = vmatpush1.msra.mxu0 0.0
    %1298 = vmatprep.subr.mxu0 0.0
    %1299 = vmatpush1.msra.mxu0 0.0
    %1300 = vmatprep.subr.mxu0 0.0
    %1301 = vmatpush1.msra.mxu0 0.0
    %1302 = vmatprep.subr.mxu0 0.0
    %1303 = vmatpush1.msra.mxu0 0.0
    %1304 = vmatprep.subr.mxu0 0.0
    %1305 = vmatpush1.msra.mxu0 0.0
    %1306 = vmatprep.subr.mxu0 0.0
    %1307 = vmatpush1.msra.mxu0 0.0
    %1308 = vmatprep.subr.mxu0 0.0
    %1309 = vmatpush1.msra.mxu0 0.0
    %1310 = vmatprep.subr.mxu0 0.0
    %1311 = vmatpush1.msra.mxu0 0.0
    %1312 = vmatprep.subr.mxu0 0.0
    %1313 = vmatpush1.msra.mxu0 0.0
    %1314 = vmatprep.subr.mxu0 0.0
    %1315 = vmatpush1.msra.mxu0 0.0
    %1316 = vmatprep.mubr.f32.mxu0 0.0
    %1317 = vmatmul.mubr.f32.gmra.mrb[0].mxu0 %v1241
    %v1318 = vpop.f32.mrb[0].mxu0
    %v1319 = vadd.f32 0.0, %v1318
    %v1320 = vpop.f32.mrb[0].mxu0
    %1321 = vmatprep.mubr.f32.mxu0 0.0
    %1322 = vmatmul.mubr.f32.gmra.mrb[0].mxu0 %v1244
    %v1323 = vpop.f32.mrb[0].mxu0
    %v1324 = vadd.f32 0.0, %v1323
    %v1325 = vpop.f32.mrb[0].mxu0
    %1326 = vmatprep.mubr.f32.mxu0 0.0
    %1327 = vmatmul.mubr.f32.gmra.mrb[0].mxu0 %v1247
    %v1328 = vpop.f32.mrb[0].mxu0
    %v1329 = vadd.f32 0.0, %v1328
    %v1330 = vpop.f32.mrb[0].mxu0
    %1331 = vmatprep.mubr.f32.mxu0 0.0
    %1332 = vmatmul.mubr.f32.gmra.mrb[0].mxu0 %v1250
    %v1333 = vpop.f32.mrb[0].mxu0
    %v1334 = vadd.f32 0.0, %v1333
    %v1335 = vpop.f32.mrb[0].mxu0
    %1336 = vdwg.mxu0
    %1337 = vmatprep.subr.mxu0 0.0
    %1338 = vmatpush1.msra.mxu0 %v1228
    %1339 = vmatprep.subr.mxu0 0.0
    %1340 = vmatpush1.msra.mxu0 %v1230
    %1341 = vmatprep.subr.mxu0 0.0
    %1342 = vmatpush1.msra.mxu0 %v1232
    %1343 = vmatprep.subr.mxu0 0.0
    %1344 = vmatpush1.msra.mxu0 %v1234
    %1345 = vmatprep.subr.mxu0 0.0
    %1346 = vmatpush1.msra.mxu0 0.0
    %1347 = vmatprep.subr.mxu0 0.0
    %1348 = vmatpush1.msra.mxu0 0.0
    %1349 = vmatprep.subr.mxu0 0.0
    %1350 = vmatpush1.msra.mxu0 0.0
    %1351 = vmatprep.subr.mxu0 0.0
    %1352 = vmatpush1.msra.mxu0 0.0
    %1353 = vmatprep.subr.mxu0 0.0
    %1354 = vmatpush1.msra.mxu0 0.0
    %1355 = vmatprep.subr.mxu0 0.0
    %1356 = vmatpush1.msra.mxu0 0.0
    %1357 = vmatprep.subr.mxu0 0.0
    %1358 = vmatpush1.msra.mxu0 0.0
    %1359 = vmatprep.subr.mxu0 0.0
    %1360 = vmatpush1.msra.mxu0 0.0
    %1361 = vmatprep.subr.mxu0 0.0
    %1362 = vmatpush1.msra.mxu0 0.0
    %1363 = vmatprep.subr.mxu0 0.0
    %1364 = vmatpush1.msra.mxu0 0.0
    %1365 = vmatprep.subr.mxu0 0.0
    %1366 = vmatpush1.msra.mxu0 0.0
    %1367 = vmatprep.subr.mxu0 0.0
    %1368 = vmatpush1.msra.mxu0 0.0
    %1369 = vmatprep.subr.mxu0 0.0
    %1370 = vmatpush1.msra.mxu0 0.0
    %1371 = vmatprep.subr.mxu0 0.0
    %1372 = vmatpush1.msra.mxu0 0.0
    %1373 = vmatprep.subr.mxu0 0.0
    %1374 = vmatpush1.msra.mxu0 0.0
    %1375 = vmatprep.subr.mxu0 0.0
    %1376 = vmatpush1.msra.mxu0 0.0
    %1377 = vmatprep.subr.mxu0 0.0
    %1378 = vmatpush1.msra.mxu0 0.0
    %1379 = vmatprep.subr.mxu0 0.0
    %1380 = vmatpush1.msra.mxu0 0.0
    %1381 = vmatprep.subr.mxu0 0.0
    %1382 = vmatpush1.msra.mxu0 0.0
    %1383 = vmatprep.subr.mxu0 0.0
    %1384 = vmatpush1.msra.mxu0 0.0
    %1385 = vmatprep.subr.mxu0 0.0
    %1386 = vmatpush1.msra.mxu0 0.0
    %1387 = vmatprep.subr.mxu0 0.0
    %1388 = vmatpush1.msra.mxu0 0.0
    %1389 = vmatprep.subr.mxu0 0.0
    %1390 = vmatpush1.msra.mxu0 0.0
    %1391 = vmatprep.subr.mxu0 0.0
    %1392 = vmatpush1.msra.mxu0 0.0
    %1393 = vmatprep.subr.mxu0 0.0
    %1394 = vmatpush1.msra.mxu0 0.0
    %1395 = vmatprep.subr.mxu0 0.0
    %1396 = vmatpush1.msra.mxu0 0.0
    %1397 = vmatprep.subr.mxu0 0.0
    %1398 = vmatpush1.msra.mxu0 0.0
    %1399 = vmatprep.subr.mxu0 0.0
    %1400 = vmatpush1.msra.mxu0 0.0
    %1401 = vmatprep.mubr.f32.mxu0 0.0
    %1402 = vmatmul.mubr.f32.gmra.mrb[0].mxu0 %v1241
    %v1403 = vpop.f32.mrb[0].mxu0
    %v1404 = vadd.f32 0.0, %v1403
    %v1405 = vpop.f32.mrb[0].mxu0
    %1406 = vmatprep.mubr.f32.mxu0 0.0
    %1407 = vmatmul.mubr.f32.gmra.mrb[0].mxu0 %v1244
    %v1408 = vpop.f32.mrb[0].mxu0
    %v1409 = vadd.f32 0.0, %v1408
    %v1410 = vpop.f32.mrb[0].mxu0
    %1411 = vmatprep.mubr.f32.mxu0 0.0
    %1412 = vmatmul.mubr.f32.gmra.mrb[0].mxu0 %v1247
    %v1413 = vpop.f32.mrb[0].mxu0
    %v1414 = vadd.f32 0.0, %v1413
    %v1415 = vpop.f32.mrb[0].mxu0
    %1416 = vmatprep.mubr.f32.mxu0 0.0
    %1417 = vmatmul.mubr.f32.gmra.mrb[0].mxu0 %v1250
    %v1418 = vpop.f32.mrb[0].mxu0
    %v1419 = vadd.f32 0.0, %v1418
    %v1420 = vpop.f32.mrb[0].mxu0
    %1421 = vdwg.mxu0
    %v1422 = vmul.f32 %v1319, %v1319
    %v1423 = vmul.f32 %v1324, %v1324
    %v1424 = vmul.f32 %v1329, %v1329
    %v1425 = vmul.f32 %v1334, %v1334
    %v1426 = vsub.f32 %v1404, %v1422
    %v1427 = vsub.f32 %v1409, %v1423
    %v1428 = vsub.f32 %v1414, %v1424
    %v1429 = vsub.f32 %v1419, %v1425
    %v1430 = vmax.f32 %v1426, 0.0
    %v1431 = vmax.f32 %v1427, 0.0
    %v1432 = vmax.f32 %v1428, 0.0
    %v1433 = vmax.f32 %v1429, 0.0
    %v1434 = vadd.f32 %v1430, 1e-05
    %v1435 = vadd.f32 %v1431, 1e-05
    %v1436 = vadd.f32 %v1432, 1e-05
    %v1437 = vadd.f32 %v1433, 1e-05
    %v1438 = vrsqrt.pop %v1434
    %v1439 = vrsqrt.pop %v1435
    %v1440 = vrsqrt.pop %v1436
    %v1441 = vrsqrt.pop %v1437
    %1442 = vrot.lane.b32.xlu0 %v1236, 96
    %v1443 = vpop.permute.xlu0 %1442
    %1444 = vrot.lane.b32.xlu0 %v1237, 96
    %v1445 = vpop.permute.xlu0 %1444
    %1446 = vrot.lane.b32.xlu0 %v1238, 96
    %v1447 = vpop.permute.xlu0 %1446
    %1448 = vrot.lane.b32.xlu0 %v1239, 96
    %v1449 = vpop.permute.xlu0 %1448
    %v1454 = vmul.f32 %v1438, %v1443
    %v1455 = vmul.f32 %v1439, %v1445
    %v1456 = vmul.f32 %v1440, %v1447
    %v1457 = vmul.f32 %v1441, %v1449
    %v1458 = vmul.f32 %v1319, %v1454
    %v1459 = vmul.f32 %v1324, %v1455
    %v1460 = vmul.f32 %v1329, %v1456
    %v1461 = vmul.f32 %v1334, %v1457
    %1466 = vrot.lane.b32.xlu0 %v1458, 33
    %v1467 = vpop.permute.xlu0 %1466
    %1468 = vrot.lane.b32.xlu0 %v1459, 33
    %v1469 = vpop.permute.xlu0 %1468
    %1470 = vrot.lane.b32.xlu0 %v1460, 33
    %v1471 = vpop.permute.xlu0 %1470
    %1472 = vrot.lane.b32.xlu0 %v1461, 33
    %v1473 = vpop.permute.xlu0 %1472
    %v1478 = vsub.f32 %v1236, %v1467
    %v1479 = vsub.f32 %v1237, %v1469
    %v1480 = vsub.f32 %v1238, %v1471
    %v1481 = vsub.f32 %v1239, %v1473
    %1483 = vset.pattern.permute.xlu0 0
    %1484 = vperm.xlu0 %1483, %v1454
    %v1485 = vpop.permute.xlu0 %1484
    %1488 = vset.pattern.permute.xlu0 0
    %1489 = vperm.xlu0 %1488, %v1455
    %v1490 = vpop.permute.xlu0 %1489
    %1493 = vset.pattern.permute.xlu0 0
    %1494 = vperm.xlu0 %1493, %v1456
    %v1495 = vpop.permute.xlu0 %1494
    %1498 = vset.pattern.permute.xlu0 0
    %1499 = vperm.xlu0 %1498, %v1457
    %v1500 = vpop.permute.xlu0 %1499
    %v1502 = vmul.f32 %v1201, %v1485
    %v1503 = vmul.f32 %v1204, %v1490
    %v1504 = vmul.f32 %v1209, %v1495
    %v1505 = vmul.f32 %v1212, %v1500
    %1507 = vset.pattern.permute.xlu0 33
    %1508 = vperm.xlu0 %1507, %v1478
    %v1509 = vpop.permute.xlu0 %1508
    %1512 = vset.pattern.permute.xlu0 33
    %1513 = vperm.xlu0 %1512, %v1479
    %v1514 = vpop.permute.xlu0 %1513
    %1517 = vset.pattern.permute.xlu0 33
    %1518 = vperm.xlu0 %1517, %v1480
    %v1519 = vpop.permute.xlu0 %1518
    %1522 = vset.pattern.permute.xlu0 33
    %1523 = vperm.xlu0 %1522, %v1481
    %v1524 = vpop.permute.xlu0 %1523
    %v1526 = vadd.f32 %v1502, %v1509
    %v1527 = vadd.f32 %v1503, %v1514
    %v1528 = vadd.f32 %v1504, %v1519
    %v1529 = vadd.f32 %v1505, %v1524
    %vm1530 = vcmp.gt.f32.partialorder %v1526, 0.0
    %vm1531 = vcmp.gt.f32.partialorder %v1527, 0.0
    %vm1532 = vcmp.gt.f32.partialorder %v1528, 0.0
    %vm1533 = vcmp.gt.f32.partialorder %v1529, 0.0
    %v1534 = vmul.f32 %v1526, 0.2
    %v1535 = vmul.f32 %v1527, 0.2
    %v1536 = vmul.f32 %v1528, 0.2
    %v1537 = vmul.f32 %v1529, 0.2
    %v1538 = vsel %vm1530, %v1526, %v1534
    %v1539 = vsel %vm1531, %v1527, %v1535
    %v1540 = vsel %vm1532, %v1528, %v1536
    %v1541 = vsel %vm1533, %v1529, %v1537
    %v1542 = vpack.c.bf16 %v1539, %v1538
    %v1543 = vpack.c.bf16 %v1541, %v1540
    %s1544 = scalar_lea.vmem [#allocation5], 384
    %v1545 = vld [vmem:[%s1544] sm:$0xf]
    %v1546 = vld [vmem:[%s1544 + $0x4] sm:$0xf]
    %v1547 = vld [vmem:[%s1544 + $0x8] sm:$0xf]
    %v1548 = vld [vmem:[%s1544 + $0xc] sm:$0xf]
    %v1549 = vld [vmem:[%s1544 + $0x10] sm:$0xf]
    %v1550 = vld [vmem:[%s1544 + $0x14] sm:$0xf]
    %v1551 = vld [vmem:[%s1544 + $0x18] sm:$0xf]
    %v1552 = vld [vmem:[%s1544 + $0x1c] sm:$0xf]
    %v1553 = vld [vmem:[%s1544 + $0x20] sm:$0xf]
    %v1554 = vld [vmem:[%s1544 + $0x24] sm:$0xf]
    %v1555 = vld [vmem:[%s1544 + $0x28] sm:$0xf]
    %v1556 = vld [vmem:[%s1544 + $0x2c] sm:$0xf]
    %v1557 = vld [vmem:[%s1544 + $0x30] sm:$0xf]
    %v1558 = vld [vmem:[%s1544 + $0x34] sm:$0xf]
    %v1559 = vld [vmem:[%s1544 + $0x38] sm:$0xf]
    %v1560 = vld [vmem:[%s1544 + $0x3c] sm:$0xf]
    %v1577 = vunpack.c.l.b16 %v1545
    %v1578 = vunpack.c.l.b16 %v1546
    %v1579 = vunpack.c.l.b16 %v1547
    %v1580 = vunpack.c.l.b16 %v1548
    %v1581 = vunpack.c.l.b16 %v1549
    %v1582 = vunpack.c.l.b16 %v1550
    %v1583 = vunpack.c.l.b16 %v1551
    %v1584 = vunpack.c.l.b16 %v1552
    %v1585 = vunpack.c.l.b16 %v1553
    %v1586 = vunpack.c.l.b16 %v1554
    %v1587 = vunpack.c.l.b16 %v1555
    %v1588 = vunpack.c.l.b16 %v1556
    %v1589 = vunpack.c.l.b16 %v1557
    %v1590 = vunpack.c.l.b16 %v1558
    %v1591 = vunpack.c.l.b16 %v1559
    %v1592 = vunpack.c.l.b16 %v1560
    %v1593 = vpack.c.b16 %v1578, %v1577
    %v1594 = vpack.c.b16 %v1580, %v1579
    %v1595 = vpack.c.b16 %v1582, %v1581
    %v1596 = vpack.c.b16 %v1584, %v1583
    %v1597 = vpack.c.b16 %v1586, %v1585
    %v1598 = vpack.c.b16 %v1588, %v1587
    %v1599 = vpack.c.b16 %v1590, %v1589
    %v1600 = vpack.c.b16 %v1592, %v1591
    %1609 = vmatprep.subr.bf16.mxu0 0
    %1610 = vmatpush1.bf16.msra.mxu0 %v1593
    %1611 = vmatprep.subr.bf16.mxu0 0
    %1612 = vmatpush1.bf16.msra.mxu0 %v1594
    %1613 = vmatprep.subr.bf16.mxu0 0
    %1614 = vmatpush1.bf16.msra.mxu0 %v1595
    %1615 = vmatprep.subr.bf16.mxu0 0
    %1616 = vmatpush1.bf16.msra.mxu0 %v1596
    %1617 = vmatprep.subr.bf16.mxu0 0
    %1618 = vmatpush1.bf16.msra.mxu0 %v1597
    %1619 = vmatprep.subr.bf16.mxu0 0
    %1620 = vmatpush1.bf16.msra.mxu0 %v1598
    %1621 = vmatprep.subr.bf16.mxu0 0
    %1622 = vmatpush1.bf16.msra.mxu0 %v1599
    %1623 = vmatprep.subr.bf16.mxu0 0
    %1624 = vmatpush1.bf16.msra.mxu0 %v1600
    %1625 = vmatprep.subr.bf16.mxu0 0
    %1626 = vmatpush1.bf16.msra.mxu0 0
    %1627 = vmatprep.subr.bf16.mxu0 0
    %1628 = vmatpush1.bf16.msra.mxu0 0
    %1629 = vmatprep.subr.bf16.mxu0 0
    %1630 = vmatpush1.bf16.msra.mxu0 0
    %1631 = vmatprep.subr.bf16.mxu0 0
    %1632 = vmatpush1.bf16.msra.mxu0 0
    %1633 = vmatprep.subr.bf16.mxu0 0
    %1634 = vmatpush1.bf16.msra.mxu0 0
    %1635 = vmatprep.subr.bf16.mxu0 0
    %1636 = vmatpush1.bf16.msra.mxu0 0
    %1637 = vmatprep.subr.bf16.mxu0 0
    %1638 = vmatpush1.bf16.msra.mxu0 0
    %1639 = vmatprep.subr.bf16.mxu0 0
    %1640 = vmatpush1.bf16.msra.mxu0 0
    %1641 = vmatprep.mubr.bf16.mxu0 0
    %1642 = vmatmul.mubr.bf16.gmra.mrb[0].mxu0 %v1542
    %v1643 = vpop.f32.mrb[0].mxu0
    %v1644 = vadd.f32 0.0, %v1643
    %v1645 = vpop.f32.mrb[0].mxu0
    %v1646 = vpop.f32.mrb[0].mxu0
    %v1647 = vadd.f32 0.0, %v1646
    %v1648 = vpop.f32.mrb[0].mxu0
    %1649 = vmatprep.mubr.bf16.mxu0 0
    %1650 = vmatmul.mubr.bf16.gmra.mrb[0].mxu0 %v1543
    %v1651 = vpop.f32.mrb[0].mxu0
    %v1652 = vadd.f32 0.0, %v1651
    %v1653 = vpop.f32.mrb[0].mxu0
    %v1654 = vpop.f32.mrb[0].mxu0
    %v1655 = vadd.f32 0.0, %v1654
    %v1656 = vpop.f32.mrb[0].mxu0
    %1657 = vdwg.mxu0
    %s1658 = scalar_lea.vmem [#allocation5], 448
    %v1659 = vld [vmem:[%s1658] sm:$0xf]
    %v1660 = vld [vmem:[%s1658 + $0x4] sm:$0xf]
    %v1661 = vld [vmem:[%s1658 + $0x8] sm:$0xf]
    %v1662 = vld [vmem:[%s1658 + $0xc] sm:$0xf]
    %v1663 = vld [vmem:[%s1658 + $0x10] sm:$0xf]
    %v1664 = vld [vmem:[%s1658 + $0x14] sm:$0xf]
    %v1665 = vld [vmem:[%s1658 + $0x18] sm:$0xf]
    %v1666 = vld [vmem:[%s1658 + $0x1c] sm:$0xf]
    %v1667 = vld [vmem:[%s1658 + $0x20] sm:$0xf]
    %v1668 = vld [vmem:[%s1658 + $0x24] sm:$0xf]
    %v1669 = vld [vmem:[%s1658 + $0x28] sm:$0xf]
    %v1670 = vld [vmem:[%s1658 + $0x2c] sm:$0xf]
    %v1671 = vld [vmem:[%s1658 + $0x30] sm:$0xf]
    %v1672 = vld [vmem:[%s1658 + $0x34] sm:$0xf]
    %v1673 = vld [vmem:[%s1658 + $0x38] sm:$0xf]
    %v1674 = vld [vmem:[%s1658 + $0x3c] sm:$0xf]
    %v1691 = vunpack.c.l.b16 %v1659
    %v1692 = vunpack.c.l.b16 %v1660
    %v1693 = vunpack.c.l.b16 %v1661
    %v1694 = vunpack.c.l.b16 %v1662
    %v1695 = vunpack.c.l.b16 %v1663
    %v1696 = vunpack.c.l.b16 %v1664
    %v1697 = vunpack.c.l.b16 %v1665
    %v1698 = vunpack.c.l.b16 %v1666
    %v1699 = vunpack.c.l.b16 %v1667
    %v1700 = vunpack.c.l.b16 %v1668
    %v1701 = vunpack.c.l.b16 %v1669
    %v1702 = vunpack.c.l.b16 %v1670
    %v1703 = vunpack.c.l.b16 %v1671
    %v1704 = vunpack.c.l.b16 %v1672
    %v1705 = vunpack.c.l.b16 %v1673
    %v1706 = vunpack.c.l.b16 %v1674
    %v1707 = vpack.c.b16 %v1692, %v1691
    %v1708 = vpack.c.b16 %v1694, %v1693
    %v1709 = vpack.c.b16 %v1696, %v1695
    %v1710 = vpack.c.b16 %v1698, %v1697
    %v1711 = vpack.c.b16 %v1700, %v1699
    %v1712 = vpack.c.b16 %v1702, %v1701
    %v1713 = vpack.c.b16 %v1704, %v1703
    %v1714 = vpack.c.b16 %v1706, %v1705
    %1723 = vmatprep.subr.bf16.mxu0 0
    %1724 = vmatpush1.bf16.msra.mxu0 %v1707
    %1725 = vmatprep.subr.bf16.mxu0 0
    %1726 = vmatpush1.bf16.msra.mxu0 %v1708
    %1727 = vmatprep.subr.bf16.mxu0 0
    %1728 = vmatpush1.bf16.msra.mxu0 %v1709
    %1729 = vmatprep.subr.bf16.mxu0 0
    %1730 = vmatpush1.bf16.msra.mxu0 %v1710
    %1731 = vmatprep.subr.bf16.mxu0 0
    %1732 = vmatpush1.bf16.msra.mxu0 %v1711
    %1733 = vmatprep.subr.bf16.mxu0 0
    %1734 = vmatpush1.bf16.msra.mxu0 %v1712
    %1735 = vmatprep.subr.bf16.mxu0 0
    %1736 = vmatpush1.bf16.msra.mxu0 %v1713
    %1737 = vmatprep.subr.bf16.mxu0 0
    %1738 = vmatpush1.bf16.msra.mxu0 %v1714
    %1739 = vmatprep.subr.bf16.mxu0 0
    %1740 = vmatpush1.bf16.msra.mxu0 0
    %1741 = vmatprep.subr.bf16.mxu0 0
    %1742 = vmatpush1.bf16.msra.mxu0 0
    %1743 = vmatprep.subr.bf16.mxu0 0
    %1744 = vmatpush1.bf16.msra.mxu0 0
    %1745 = vmatprep.subr.bf16.mxu0 0
    %1746 = vmatpush1.bf16.msra.mxu0 0
    %1747 = vmatprep.subr.bf16.mxu0 0
    %1748 = vmatpush1.bf16.msra.mxu0 0
    %1749 = vmatprep.subr.bf16.mxu0 0
    %1750 = vmatpush1.bf16.msra.mxu0 0
    %1751 = vmatprep.subr.bf16.mxu0 0
    %1752 = vmatpush1.bf16.msra.mxu0 0
    %1753 = vmatprep.subr.bf16.mxu0 0
    %1754 = vmatpush1.bf16.msra.mxu0 0
    %1755 = vmatprep.mubr.bf16.mxu0 0
    %1756 = vmatmul.mubr.bf16.gmra.mrb[0].mxu0 %v1542
    %v1757 = vpop.f32.mrb[0].mxu0
    %v1758 = vadd.f32 0.0, %v1757
    %v1759 = vpop.f32.mrb[0].mxu0
    %v1760 = vpop.f32.mrb[0].mxu0
    %v1761 = vadd.f32 0.0, %v1760
    %v1762 = vpop.f32.mrb[0].mxu0
    %1763 = vmatprep.mubr.bf16.mxu0 0
    %1764 = vmatmul.mubr.bf16.gmra.mrb[0].mxu0 %v1543
    %v1765 = vpop.f32.mrb[0].mxu0
    %v1766 = vadd.f32 0.0, %v1765
    %v1767 = vpop.f32.mrb[0].mxu0
    %v1768 = vpop.f32.mrb[0].mxu0
    %v1769 = vadd.f32 0.0, %v1768
    %v1770 = vpop.f32.mrb[0].mxu0
    %1771 = vdwg.mxu0
    %s1772 = scalar_lea.vmem [#allocation5], 512
    %v1773 = vld [vmem:[%s1772] sm:$0xf]
    %v1774 = vld [vmem:[%s1772 + $0x4] sm:$0xf]
    %v1775 = vld [vmem:[%s1772 + $0x8] sm:$0xf]
    %v1776 = vld [vmem:[%s1772 + $0xc] sm:$0xf]
    %v1777 = vld [vmem:[%s1772 + $0x10] sm:$0xf]
    %v1778 = vld [vmem:[%s1772 + $0x14] sm:$0xf]
    %v1779 = vld [vmem:[%s1772 + $0x18] sm:$0xf]
    %v1780 = vld [vmem:[%s1772 + $0x1c] sm:$0xf]
    %v1781 = vld [vmem:[%s1772 + $0x20] sm:$0xf]
    %v1782 = vld [vmem:[%s1772 + $0x24] sm:$0xf]
    %v1783 = vld [vmem:[%s1772 + $0x28] sm:$0xf]
    %v1784 = vld [vmem:[%s1772 + $0x2c] sm:$0xf]
    %v1785 = vld [vmem:[%s1772 + $0x30] sm:$0xf]
    %v1786 = vld [vmem:[%s1772 + $0x34] sm:$0xf]
    %v1787 = vld [vmem:[%s1772 + $0x38] sm:$0xf]
    %v1788 = vld [vmem:[%s1772 + $0x3c] sm:$0xf]
    %v1805 = vunpack.c.l.b16 %v1773
    %v1806 = vunpack.c.l.b16 %v1774
    %v1807 = vunpack.c.l.b16 %v1775
    %v1808 = vunpack.c.l.b16 %v1776
    %v1809 = vunpack.c.l.b16 %v1777
    %v1810 = vunpack.c.l.b16 %v1778
    %v1811 = vunpack.c.l.b16 %v1779
    %v1812 = vunpack.c.l.b16 %v1780
    %v1813 = vunpack.c.l.b16 %v1781
    %v1814 = vunpack.c.l.b16 %v1782
    %v1815 = vunpack.c.l.b16 %v1783
    %v1816 = vunpack.c.l.b16 %v1784
    %v1817 = vunpack.c.l.b16 %v1785
    %v1818 = vunpack.c.l.b16 %v1786
    %v1819 = vunpack.c.l.b16 %v1787
    %v1820 = vunpack.c.l.b16 %v1788
    %v1821 = vpack.c.b16 %v1806, %v1805
    %v1822 = vpack.c.b16 %v1808, %v1807
    %v1823 = vpack.c.b16 %v1810, %v1809
    %v1824 = vpack.c.b16 %v1812, %v1811
    %v1825 = vpack.c.b16 %v1814, %v1813
    %v1826 = vpack.c.b16 %v1816, %v1815
    %v1827 = vpack.c.b16 %v1818, %v1817
    %v1828 = vpack.c.b16 %v1820, %v1819
    %1837 = vmatprep.subr.bf16.mxu0 0
    %1838 = vmatpush1.bf16.msra.mxu0 %v1821
    %1839 = vmatprep.subr.bf16.mxu0 0
    %1840 = vmatpush1.bf16.msra.mxu0 %v1822
    %1841 = vmatprep.subr.bf16.mxu0 0
    %1842 = vmatpush1.bf16.msra.mxu0 %v1823
    %1843 = vmatprep.subr.bf16.mxu0 0
    %1844 = vmatpush1.bf16.msra.mxu0 %v1824
    %1845 = vmatprep.subr.bf16.mxu0 0
    %1846 = vmatpush1.bf16.msra.mxu0 %v1825
    %1847 = vmatprep.subr.bf16.mxu0 0
    %1848 = vmatpush1.bf16.msra.mxu0 %v1826
    %1849 = vmatprep.subr.bf16.mxu0 0
    %1850 = vmatpush1.bf16.msra.mxu0 %v1827
    %1851 = vmatprep.subr.bf16.mxu0 0
    %1852 = vmatpush1.bf16.msra.mxu0 %v1828
    %1853 = vmatprep.subr.bf16.mxu0 0
    %1854 = vmatpush1.bf16.msra.mxu0 0
    %1855 = vmatprep.subr.bf16.mxu0 0
    %1856 = vmatpush1.bf16.msra.mxu0 0
    %1857 = vmatprep.subr.bf16.mxu0 0
    %1858 = vmatpush1.bf16.msra.mxu0 0
    %1859 = vmatprep.subr.bf16.mxu0 0
    %1860 = vmatpush1.bf16.msra.mxu0 0
    %1861 = vmatprep.subr.bf16.mxu0 0
    %1862 = vmatpush1.bf16.msra.mxu0 0
    %1863 = vmatprep.subr.bf16.mxu0 0
    %1864 = vmatpush1.bf16.msra.mxu0 0
    %1865 = vmatprep.subr.bf16.mxu0 0
    %1866 = vmatpush1.bf16.msra.mxu0 0
    %1867 = vmatprep.subr.bf16.mxu0 0
    %1868 = vmatpush1.bf16.msra.mxu0 0
    %1869 = vmatprep.mubr.bf16.mxu0 0
    %1870 = vmatmul.mubr.bf16.gmra.mrb[0].mxu0 %v1542
    %v1871 = vpop.f32.mrb[0].mxu0
    %v1872 = vadd.f32 0.0, %v1871
    %v1873 = vpop.f32.mrb[0].mxu0
    %v1874 = vpop.f32.mrb[0].mxu0
    %v1875 = vadd.f32 0.0, %v1874
    %v1876 = vpop.f32.mrb[0].mxu0
    %1877 = vmatprep.mubr.bf16.mxu0 0
    %1878 = vmatmul.mubr.bf16.gmra.mrb[0].mxu0 %v1543
    %v1879 = vpop.f32.mrb[0].mxu0
    %v1880 = vadd.f32 0.0, %v1879
    %v1881 = vpop.f32.mrb[0].mxu0
    %v1882 = vpop.f32.mrb[0].mxu0
    %v1883 = vadd.f32 0.0, %v1882
    %v1884 = vpop.f32.mrb[0].mxu0
    %1885 = vdwg.mxu0
    %s1886 = scalar_lea.vmem [#allocation7], 32
    %v1887 = vld [vmem:[%s1886] sm:$0xf]
    %v1888 = vld [vmem:[%s1886 + $0x4] sm:$0xf]
    %v1889 = vld [vmem:[%s1886 + $0x8] sm:$0xf]
    %v1890 = vld [vmem:[%s1886 + $0xc] sm:$0xf]
    %v1891 = vpack.c.bf16 %v1647, %v1644
    %v1892 = vpack.c.bf16 %v1655, %v1652
    %v1893 = vpack.c.bf16 %v1761, %v1758
    %v1894 = vpack.c.bf16 %v1769, %v1766
    %v1895 = vpack.c.bf16 %v1875, %v1872
    %v1896 = vpack.c.bf16 %v1883, %v1880
    %v1901 = vunpack.c.l.b16 %v1887
    %v1902 = vunpack.c.l.b16 %v1888
    %v1903 = vunpack.c.l.b16 %v1889
    %v1904 = vunpack.c.l.b16 %v1890
    %v1905 = vpack.c.b16 %v1902, %v1901
    %v1906 = vpack.c.b16 %v1904, %v1903
    %v1908 = vsel %vm1159, %v1905, 0
    %v1911 = vsel %vm1159, %v1906, 0
    %1913 = vmatprep.subr.bf16.mxu0 0
    %1914 = vmatpush1.bf16.msra.mxu0 %v1891
    %1915 = vmatprep.subr.bf16.mxu0 0
    %1916 = vmatpush1.bf16.msra.mxu0 %v1892
    %1917 = vmatprep.subr.bf16.mxu0 0
    %1918 = vmatpush1.bf16.msra.mxu0 %v1893
    %1919 = vmatprep.subr.bf16.mxu0 0
    %1920 = vmatpush1.bf16.msra.mxu0 %v1894
    %1921 = vmatprep.subr.bf16.mxu0 0
    %1922 = vmatpush1.bf16.msra.mxu0 %v1895
    %1923 = vmatprep.subr.bf16.mxu0 0
    %1924 = vmatpush1.bf16.msra.mxu0 %v1896
    %1925 = vmatprep.subr.bf16.mxu0 0
    %1926 = vmatpush1.bf16.msra.mxu0 0
    %1927 = vmatprep.subr.bf16.mxu0 0
    %1928 = vmatpush1.bf16.msra.mxu0 0
    %1929 = vmatprep.subr.bf16.mxu0 0
    %1930 = vmatpush1.bf16.msra.mxu0 0
    %1931 = vmatprep.subr.bf16.mxu0 0
    %1932 = vmatpush1.bf16.msra.mxu0 0
    %1933 = vmatprep.subr.bf16.mxu0 0
    %1934 = vmatpush1.bf16.msra.mxu0 0
    %1935 = vmatprep.subr.bf16.mxu0 0
    %1936 = vmatpush1.bf16.msra.mxu0 0
    %1937 = vmatprep.subr.bf16.mxu0 0
    %1938 = vmatpush1.bf16.msra.mxu0 0
    %1939 = vmatprep.subr.bf16.mxu0 0
    %1940 = vmatpush1.bf16.msra.mxu0 0
    %1941 = vmatprep.subr.bf16.mxu0 0
    %1942 = vmatpush1.bf16.msra.mxu0 0
    %1943 = vmatprep.subr.bf16.mxu0 0
    %1944 = vmatpush1.bf16.msra.mxu0 0
    %1945 = vmatprep.mubr.bf16.mxu0 0
    %1946 = vmatmul.mubr.bf16.gmra.mrb[0].mxu0 %v1908
    %v1947 = vpop.f32.mrb[0].mxu0
    %v1948 = vadd.f32 0.0, %v1947
    %v1949 = vpop.f32.mrb[0].mxu0
    %v1950 = vpop.f32.mrb[0].mxu0
    %v1951 = vadd.f32 0.0, %v1950
    %v1952 = vpop.f32.mrb[0].mxu0
    %1953 = vmatprep.mubr.bf16.mxu0 0
    %1954 = vmatmul.mubr.bf16.gmra.mrb[0].mxu0 %v1911
    %v1955 = vpop.f32.mrb[0].mxu0
    %v1956 = vadd.f32 0.0, %v1955
    %v1957 = vpop.f32.mrb[0].mxu0
    %v1958 = vpop.f32.mrb[0].mxu0
    %v1959 = vadd.f32 0.0, %v1958
    %v1960 = vpop.f32.mrb[0].mxu0
    %1961 = vdwg.mxu0
    %1962 = vadd.xlane.f32.xlu0 %v1948
    %v1963 = vpop.xlane.xlu0 %1962
    %1964 = vadd.xlane.f32.xlu0 %v1951
    %v1965 = vpop.xlane.xlu0 %1964
    %1966 = vadd.xlane.f32.xlu0 %v1956
    %v1967 = vpop.xlane.xlu0 %1966
    %1968 = vadd.xlane.f32.xlu0 %v1959
    %v1969 = vpop.xlane.xlu0 %1968
    %v1970 = vmul.f32 %v1948, %v1948
    %v1971 = vmul.f32 %v1951, %v1951
    %v1972 = vmul.f32 %v1956, %v1956
    %v1973 = vmul.f32 %v1959, %v1959
    %1974 = vadd.xlane.f32.xlu0 %v1970
    %v1975 = vpop.xlane.xlu0 %1974
    %1976 = vadd.xlane.f32.xlu0 %v1971
    %v1977 = vpop.xlane.xlu0 %1976
    %1978 = vadd.xlane.f32.xlu0 %v1972
    %v1979 = vpop.xlane.xlu0 %1978
    %1980 = vadd.xlane.f32.xlu0 %v1973
    %v1981 = vpop.xlane.xlu0 %1980
    %s1982 = scalar_lea.vmem [#allocation8], 64
    %v1983 = vld [vmem:[%s1982] sm:$0xff]
    %v1984 = vld [vmem:[%s1982 + $0x8] sm:$0xff]
    %v1985 = vld [vmem:[%s1982 + $0x10] sm:$0xff]
    %v1986 = vld [vmem:[%s1982 + $0x18] sm:$0xff]
    %v1988 = vsel %vm491, %v1983, 0
    %v1991 = vsel %vm491, %v1984, 0
    %v1994 = vsel %vm491, %v1985, 0
    %v1997 = vsel %vm491, %v1986, 0
    %1999 = vmatprep.subr.mxu0 0.0
    %2000 = vmatpush1.msra.mxu0 %v1963
    %2001 = vmatprep.subr.mxu0 0.0
    %2002 = vmatpush1.msra.mxu0 %v1965
    %2003 = vmatprep.subr.mxu0 0.0
    %2004 = vmatpush1.msra.mxu0 %v1967
    %2005 = vmatprep.subr.mxu0 0.0
    %2006 = vmatpush1.msra.mxu0 %v1969
    %2007 = vmatprep.subr.mxu0 0.0
    %2008 = vmatpush1.msra.mxu0 0.0
    %2009 = vmatprep.subr.mxu0 0.0
    %2010 = vmatpush1.msra.mxu0 0.0
    %2011 = vmatprep.subr.mxu0 0.0
    %2012 = vmatpush1.msra.mxu0 0.0
    %2013 = vmatprep.subr.mxu0 0.0
    %2014 = vmatpush1.msra.mxu0 0.0
    %2015 = vmatprep.subr.mxu0 0.0
    %2016 = vmatpush1.msra.mxu0 0.0
    %2017 = vmatprep.subr.mxu0 0.0
    %2018 = vmatpush1.msra.mxu0 0.0
    %2019 = vmatprep.subr.mxu0 0.0
    %2020 = vmatpush1.msra.mxu0 0.0
    %2021 = vmatprep.subr.mxu0 0.0
    %2022 = vmatpush1.msra.mxu0 0.0
    %2023 = vmatprep.subr.mxu0 0.0
    %2024 = vmatpush1.msra.mxu0 0.0
    %2025 = vmatprep.subr.mxu0 0.0
    %2026 = vmatpush1.msra.mxu0 0.0
    %2027 = vmatprep.subr.mxu0 0.0
    %2028 = vmatpush1.msra.mxu0 0.0
    %2029 = vmatprep.subr.mxu0 0.0
    %2030 = vmatpush1.msra.mxu0 0.0
    %2031 = vmatprep.subr.mxu0 0.0
    %2032 = vmatpush1.msra.mxu0 0.0
    %2033 = vmatprep.subr.mxu0 0.0
    %2034 = vmatpush1.msra.mxu0 0.0
    %2035 = vmatprep.subr.mxu0 0.0
    %2036 = vmatpush1.msra.mxu0 0.0
    %2037 = vmatprep.subr.mxu0 0.0
    %2038 = vmatpush1.msra.mxu0 0.0
    %2039 = vmatprep.subr.mxu0 0.0
    %2040 = vmatpush1.msra.mxu0 0.0
    %2041 = vmatprep.subr.mxu0 0.0
    %2042 = vmatpush1.msra.mxu0 0.0
    %2043 = vmatprep.subr.mxu0 0.0
    %2044 = vmatpush1.msra.mxu0 0.0
    %2045 = vmatprep.subr.mxu0 0.0
    %2046 = vmatpush1.msra.mxu0 0.0
    %2047 = vmatprep.subr.mxu0 0.0
    %2048 = vmatpush1.msra.mxu0 0.0
    %2049 = vmatprep.subr.mxu0 0.0
    %2050 = vmatpush1.msra.mxu0 0.0
    %2051 = vmatprep.subr.mxu0 0.0
    %2052 = vmatpush1.msra.mxu0 0.0
    %2053 = vmatprep.subr.mxu0 0.0
    %2054 = vmatpush1.msra.mxu0 0.0
    %2055 = vmatprep.subr.mxu0 0.0
    %2056 = vmatpush1.msra.mxu0 0.0
    %2057 = vmatprep.subr.mxu0 0.0
    %2058 = vmatpush1.msra.mxu0 0.0
    %2059 = vmatprep.subr.mxu0 0.0
    %2060 = vmatpush1.msra.mxu0 0.0
    %2061 = vmatprep.subr.mxu0 0.0
    %2062 = vmatpush1.msra.mxu0 0.0
    %2063 = vmatprep.mubr.f32.mxu0 0.0
    %2064 = vmatmul.mubr.f32.gmra.mrb[0].mxu0 %v1988
    %v2065 = vpop.f32.mrb[0].mxu0
    %v2066 = vadd.f32 0.0, %v2065
    %v2067 = vpop.f32.mrb[0].mxu0
    %2068 = vmatprep.mubr.f32.mxu0 0.0
    %2069 = vmatmul.mubr.f32.gmra.mrb[0].mxu0 %v1991
    %v2070 = vpop.f32.mrb[0].mxu0
    %v2071 = vadd.f32 0.0, %v2070
    %v2072 = vpop.f32.mrb[0].mxu0
    %2073 = vmatprep.mubr.f32.mxu0 0.0
    %2074 = vmatmul.mubr.f32.gmra.mrb[0].mxu0 %v1994
    %v2075 = vpop.f32.mrb[0].mxu0
    %v2076 = vadd.f32 0.0, %v2075
    %v2077 = vpop.f32.mrb[0].mxu0
    %2078 = vmatprep.mubr.f32.mxu0 0.0
    %2079 = vmatmul.mubr.f32.gmra.mrb[0].mxu0 %v1997
    %v2080 = vpop.f32.mrb[0].mxu0
    %v2081 = vadd.f32 0.0, %v2080
    %v2082 = vpop.f32.mrb[0].mxu0
    %2083 = vdwg.mxu0
    %2084 = vmatprep.subr.mxu0 0.0
    %2085 = vmatpush1.msra.mxu0 %v1975
    %2086 = vmatprep.subr.mxu0 0.0
    %2087 = vmatpush1.msra.mxu0 %v1977
    %2088 = vmatprep.subr.mxu0 0.0
    %2089 = vmatpush1.msra.mxu0 %v1979
    %2090 = vmatprep.subr.mxu0 0.0
    %2091 = vmatpush1.msra.mxu0 %v1981
    %2092 = vmatprep.subr.mxu0 0.0
    %2093 = vmatpush1.msra.mxu0 0.0
    %2094 = vmatprep.subr.mxu0 0.0
    %2095 = vmatpush1.msra.mxu0 0.0
    %2096 = vmatprep.subr.mxu0 0.0
    %2097 = vmatpush1.msra.mxu0 0.0
    %2098 = vmatprep.subr.mxu0 0.0
    %2099 = vmatpush1.msra.mxu0 0.0
    %2100 = vmatprep.subr.mxu0 0.0
    %2101 = vmatpush1.msra.mxu0 0.0
    %2102 = vmatprep.subr.mxu0 0.0
    %2103 = vmatpush1.msra.mxu0 0.0
    %2104 = vmatprep.subr.mxu0 0.0
    %2105 = vmatpush1.msra.mxu0 0.0
    %2106 = vmatprep.subr.mxu0 0.0
    %2107 = vmatpush1.msra.mxu0 0.0
    %2108 = vmatprep.subr.mxu0 0.0
    %2109 = vmatpush1.msra.mxu0 0.0
    %2110 = vmatprep.subr.mxu0 0.0
    %2111 = vmatpush1.msra.mxu0 0.0
    %2112 = vmatprep.subr.mxu0 0.0
    %2113 = vmatpush1.msra.mxu0 0.0
    %2114 = vmatprep.subr.mxu0 0.0
    %2115 = vmatpush1.msra.mxu0 0.0
    %2116 = vmatprep.subr.mxu0 0.0
    %2117 = vmatpush1.msra.mxu0 0.0
    %2118 = vmatprep.subr.mxu0 0.0
    %2119 = vmatpush1.msra.mxu0 0.0
    %2120 = vmatprep.subr.mxu0 0.0
    %2121 = vmatpush1.msra.mxu0 0.0
    %2122 = vmatprep.subr.mxu0 0.0
    %2123 = vmatpush1.msra.mxu0 0.0
    %2124 = vmatprep.subr.mxu0 0.0
    %2125 = vmatpush1.msra.mxu0 0.0
    %2126 = vmatprep.subr.mxu0 0.0
    %2127 = vmatpush1.msra.mxu0 0.0
    %2128 = vmatprep.subr.mxu0 0.0
    %2129 = vmatpush1.msra.mxu0 0.0
    %2130 = vmatprep.subr.mxu0 0.0
    %2131 = vmatpush1.msra.mxu0 0.0
    %2132 = vmatprep.subr.mxu0 0.0
    %2133 = vmatpush1.msra.mxu0 0.0
    %2134 = vmatprep.subr.mxu0 0.0
    %2135 = vmatpush1.msra.mxu0 0.0
    %2136 = vmatprep.subr.mxu0 0.0
    %2137 = vmatpush1.msra.mxu0 0.0
    %2138 = vmatprep.subr.mxu0 0.0
    %2139 = vmatpush1.msra.mxu0 0.0
    %2140 = vmatprep.subr.mxu0 0.0
    %2141 = vmatpush1.msra.mxu0 0.0
    %2142 = vmatprep.subr.mxu0 0.0
    %2143 = vmatpush1.msra.mxu0 0.0
    %2144 = vmatprep.subr.mxu0 0.0
    %2145 = vmatpush1.msra.mxu0 0.0
    %2146 = vmatprep.subr.mxu0 0.0
    %2147 = vmatpush1.msra.mxu0 0.0
    %2148 = vmatprep.mubr.f32.mxu0 0.0
    %2149 = vmatmul.mubr.f32.gmra.mrb[0].mxu0 %v1988
    %v2150 = vpop.f32.mrb[0].mxu0
    %v2151 = vadd.f32 0.0, %v2150
    %v2152 = vpop.f32.mrb[0].mxu0
    %2153 = vmatprep.mubr.f32.mxu0 0.0
    %2154 = vmatmul.mubr.f32.gmra.mrb[0].mxu0 %v1991
    %v2155 = vpop.f32.mrb[0].mxu0
    %v2156 = vadd.f32 0.0, %v2155
    %v2157 = vpop.f32.mrb[0].mxu0
    %2158 = vmatprep.mubr.f32.mxu0 0.0
    %2159 = vmatmul.mubr.f32.gmra.mrb[0].mxu0 %v1994
    %v2160 = vpop.f32.mrb[0].mxu0
    %v2161 = vadd.f32 0.0, %v2160
    %v2162 = vpop.f32.mrb[0].mxu0
    %2163 = vmatprep.mubr.f32.mxu0 0.0
    %2164 = vmatmul.mubr.f32.gmra.mrb[0].mxu0 %v1997
    %v2165 = vpop.f32.mrb[0].mxu0
    %v2166 = vadd.f32 0.0, %v2165
    %v2167 = vpop.f32.mrb[0].mxu0
    %2168 = vdwg.mxu0
    %v2169 = vmul.f32 %v2066, %v2066
    %v2170 = vmul.f32 %v2071, %v2071
    %v2171 = vmul.f32 %v2076, %v2076
    %v2172 = vmul.f32 %v2081, %v2081
    %v2173 = vsub.f32 %v2151, %v2169
    %v2174 = vsub.f32 %v2156, %v2170
    %v2175 = vsub.f32 %v2161, %v2171
    %v2176 = vsub.f32 %v2166, %v2172
    %v2177 = vmax.f32 %v2173, 0.0
    %v2178 = vmax.f32 %v2174, 0.0
    %v2179 = vmax.f32 %v2175, 0.0
    %v2180 = vmax.f32 %v2176, 0.0
    %v2181 = vadd.f32 %v2177, 1e-05
    %v2182 = vadd.f32 %v2178, 1e-05
    %v2183 = vadd.f32 %v2179, 1e-05
    %v2184 = vadd.f32 %v2180, 1e-05
    %v2185 = vrsqrt.pop %v2181
    %v2186 = vrsqrt.pop %v2182
    %v2187 = vrsqrt.pop %v2183
    %v2188 = vrsqrt.pop %v2184
    %2189 = vrot.lane.b32.xlu0 %v1983, 96
    %v2190 = vpop.permute.xlu0 %2189
    %2191 = vrot.lane.b32.xlu0 %v1984, 96
    %v2192 = vpop.permute.xlu0 %2191
    %2193 = vrot.lane.b32.xlu0 %v1985, 96
    %v2194 = vpop.permute.xlu0 %2193
    %2195 = vrot.lane.b32.xlu0 %v1986, 96
    %v2196 = vpop.permute.xlu0 %2195
    %v2201 = vmul.f32 %v2185, %v2190
    %v2202 = vmul.f32 %v2186, %v2192
    %v2203 = vmul.f32 %v2187, %v2194
    %v2204 = vmul.f32 %v2188, %v2196
    %v2205 = vmul.f32 %v2066, %v2201
    %v2206 = vmul.f32 %v2071, %v2202
    %v2207 = vmul.f32 %v2076, %v2203
    %v2208 = vmul.f32 %v2081, %v2204
    %2213 = vrot.lane.b32.xlu0 %v2205, 33
    %v2214 = vpop.permute.xlu0 %2213
    %2215 = vrot.lane.b32.xlu0 %v2206, 33
    %v2216 = vpop.permute.xlu0 %2215
    %2217 = vrot.lane.b32.xlu0 %v2207, 33
    %v2218 = vpop.permute.xlu0 %2217
    %2219 = vrot.lane.b32.xlu0 %v2208, 33
    %v2220 = vpop.permute.xlu0 %2219
    %v2225 = vsub.f32 %v1983, %v2214
    %v2226 = vsub.f32 %v1984, %v2216
    %v2227 = vsub.f32 %v1985, %v2218
    %v2228 = vsub.f32 %v1986, %v2220
    %2230 = vset.pattern.permute.xlu0 0
    %2231 = vperm.xlu0 %2230, %v2201
    %v2232 = vpop.permute.xlu0 %2231
    %2235 = vset.pattern.permute.xlu0 0
    %2236 = vperm.xlu0 %2235, %v2202
    %v2237 = vpop.permute.xlu0 %2236
    %2240 = vset.pattern.permute.xlu0 0
    %2241 = vperm.xlu0 %2240, %v2203
    %v2242 = vpop.permute.xlu0 %2241
    %2245 = vset.pattern.permute.xlu0 0
    %2246 = vperm.xlu0 %2245, %v2204
    %v2247 = vpop.permute.xlu0 %2246
    %v2249 = vmul.f32 %v1948, %v2232
    %v2250 = vmul.f32 %v1951, %v2237
    %v2251 = vmul.f32 %v1956, %v2242
    %v2252 = vmul.f32 %v1959, %v2247
    %2254 = vset.pattern.permute.xlu0 33
    %2255 = vperm.xlu0 %2254, %v2225
    %v2256 = vpop.permute.xlu0 %2255
    %2259 = vset.pattern.permute.xlu0 33
    %2260 = vperm.xlu0 %2259, %v2226
    %v2261 = vpop.permute.xlu0 %2260
    %2264 = vset.pattern.permute.xlu0 33
    %2265 = vperm.xlu0 %2264, %v2227
    %v2266 = vpop.permute.xlu0 %2265
    %2269 = vset.pattern.permute.xlu0 33
    %2270 = vperm.xlu0 %2269, %v2228
    %v2271 = vpop.permute.xlu0 %2270
    %v2273 = vadd.f32 %v2249, %v2256
    %v2274 = vadd.f32 %v2250, %v2261
    %v2275 = vadd.f32 %v2251, %v2266
    %v2276 = vadd.f32 %v2252, %v2271
    %vm2277 = vcmp.gt.f32.partialorder %v2273, 0.0
    %vm2278 = vcmp.gt.f32.partialorder %v2274, 0.0
    %vm2279 = vcmp.gt.f32.partialorder %v2275, 0.0
    %vm2280 = vcmp.gt.f32.partialorder %v2276, 0.0
    %v2281 = vmul.f32 %v2273, 0.2
    %v2282 = vmul.f32 %v2274, 0.2
    %v2283 = vmul.f32 %v2275, 0.2
    %v2284 = vmul.f32 %v2276, 0.2
    %v2285 = vsel %vm2277, %v2273, %v2281
    %v2286 = vsel %vm2278, %v2274, %v2282
    %v2287 = vsel %vm2279, %v2275, %v2283
    %v2288 = vsel %vm2280, %v2276, %v2284
    %v2289 = vpack.c.bf16 %v2286, %v2285
    %v2290 = vpack.c.bf16 %v2288, %v2287
    %s2291 = scalar_lea.vmem [#allocation5], 576
    %v2292 = vld [vmem:[%s2291] sm:$0xf]
    %v2293 = vld [vmem:[%s2291 + $0x4] sm:$0xf]
    %v2294 = vld [vmem:[%s2291 + $0x8] sm:$0xf]
    %v2295 = vld [vmem:[%s2291 + $0xc] sm:$0xf]
    %v2296 = vld [vmem:[%s2291 + $0x10] sm:$0xf]
    %v2297 = vld [vmem:[%s2291 + $0x14] sm:$0xf]
    %v2298 = vld [vmem:[%s2291 + $0x18] sm:$0xf]
    %v2299 = vld [vmem:[%s2291 + $0x1c] sm:$0xf]
    %v2300 = vld [vmem:[%s2291 + $0x20] sm:$0xf]
    %v2301 = vld [vmem:[%s2291 + $0x24] sm:$0xf]
    %v2302 = vld [vmem:[%s2291 + $0x28] sm:$0xf]
    %v2303 = vld [vmem:[%s2291 + $0x2c] sm:$0xf]
    %v2304 = vld [vmem:[%s2291 + $0x30] sm:$0xf]
    %v2305 = vld [vmem:[%s2291 + $0x34] sm:$0xf]
    %v2306 = vld [vmem:[%s2291 + $0x38] sm:$0xf]
    %v2307 = vld [vmem:[%s2291 + $0x3c] sm:$0xf]
    %v2324 = vunpack.c.l.b16 %v2292
    %v2325 = vunpack.c.l.b16 %v2293
    %v2326 = vunpack.c.l.b16 %v2294
    %v2327 = vunpack.c.l.b16 %v2295
    %v2328 = vunpack.c.l.b16 %v2296
    %v2329 = vunpack.c.l.b16 %v2297
    %v2330 = vunpack.c.l.b16 %v2298
    %v2331 = vunpack.c.l.b16 %v2299
    %v2332 = vunpack.c.l.b16 %v2300
    %v2333 = vunpack.c.l.b16 %v2301
    %v2334 = vunpack.c.l.b16 %v2302
    %v2335 = vunpack.c.l.b16 %v2303
    %v2336 = vunpack.c.l.b16 %v2304
    %v2337 = vunpack.c.l.b16 %v2305
    %v2338 = vunpack.c.l.b16 %v2306
    %v2339 = vunpack.c.l.b16 %v2307
    %v2340 = vpack.c.b16 %v2325, %v2324
    %v2341 = vpack.c.b16 %v2327, %v2326
    %v2342 = vpack.c.b16 %v2329, %v2328
    %v2343 = vpack.c.b16 %v2331, %v2330
    %v2344 = vpack.c.b16 %v2333, %v2332
    %v2345 = vpack.c.b16 %v2335, %v2334
    %v2346 = vpack.c.b16 %v2337, %v2336
    %v2347 = vpack.c.b16 %v2339, %v2338
    %2356 = vmatprep.subr.bf16.mxu0 0
    %2357 = vmatpush1.bf16.msra.mxu0 %v2340
    %2358 = vmatprep.subr.bf16.mxu0 0
    %2359 = vmatpush1.bf16.msra.mxu0 %v2341
    %2360 = vmatprep.subr.bf16.mxu0 0
    %2361 = vmatpush1.bf16.msra.mxu0 %v2342
    %2362 = vmatprep.subr.bf16.mxu0 0
    %2363 = vmatpush1.bf16.msra.mxu0 %v2343
    %2364 = vmatprep.subr.bf16.mxu0 0
    %2365 = vmatpush1.bf16.msra.mxu0 %v2344
    %2366 = vmatprep.subr.bf16.mxu0 0
    %2367 = vmatpush1.bf16.msra.mxu0 %v2345
    %2368 = vmatprep.subr.bf16.mxu0 0
    %2369 = vmatpush1.bf16.msra.mxu0 %v2346
    %2370 = vmatprep.subr.bf16.mxu0 0
    %2371 = vmatpush1.bf16.msra.mxu0 %v2347
    %2372 = vmatprep.subr.bf16.mxu0 0
    %2373 = vmatpush1.bf16.msra.mxu0 0
    %2374 = vmatprep.subr.bf16.mxu0 0
    %2375 = vmatpush1.bf16.msra.mxu0 0
    %2376 = vmatprep.subr.bf16.mxu0 0
    %2377 = vmatpush1.bf16.msra.mxu0 0
    %2378 = vmatprep.subr.bf16.mxu0 0
    %2379 = vmatpush1.bf16.msra.mxu0 0
    %2380 = vmatprep.subr.bf16.mxu0 0
    %2381 = vmatpush1.bf16.msra.mxu0 0
    %2382 = vmatprep.subr.bf16.mxu0 0
    %2383 = vmatpush1.bf16.msra.mxu0 0
    %2384 = vmatprep.subr.bf16.mxu0 0
    %2385 = vmatpush1.bf16.msra.mxu0 0
    %2386 = vmatprep.subr.bf16.mxu0 0
    %2387 = vmatpush1.bf16.msra.mxu0 0
    %2388 = vmatprep.mubr.bf16.mxu0 0
    %2389 = vmatmul.mubr.bf16.gmra.mrb[0].mxu0 %v2289
    %v2390 = vpop.f32.mrb[0].mxu0
    %v2391 = vadd.f32 0.0, %v2390
    %v2392 = vpop.f32.mrb[0].mxu0
    %v2393 = vpop.f32.mrb[0].mxu0
    %v2394 = vadd.f32 0.0, %v2393
    %v2395 = vpop.f32.mrb[0].mxu0
    %2396 = vmatprep.mubr.bf16.mxu0 0
    %2397 = vmatmul.mubr.bf16.gmra.mrb[0].mxu0 %v2290
    %v2398 = vpop.f32.mrb[0].mxu0
    %v2399 = vadd.f32 0.0, %v2398
    %v2400 = vpop.f32.mrb[0].mxu0
    %v2401 = vpop.f32.mrb[0].mxu0
    %v2402 = vadd.f32 0.0, %v2401
    %v2403 = vpop.f32.mrb[0].mxu0
    %2404 = vdwg.mxu0
    %s2405 = scalar_lea.vmem [#allocation7], 48
    %v2406 = vld [vmem:[%s2405] sm:$0xf]
    %v2407 = vld [vmem:[%s2405 + $0x4] sm:$0xf]
    %v2408 = vld [vmem:[%s2405 + $0x8] sm:$0xf]
    %v2409 = vld [vmem:[%s2405 + $0xc] sm:$0xf]
    %v2410 = vpack.c.bf16 %v2394, %v2391
    %v2411 = vpack.c.bf16 %v2402, %v2399
    %v2416 = vunpack.c.l.b16 %v2406
    %v2417 = vunpack.c.l.b16 %v2407
    %v2418 = vunpack.c.l.b16 %v2408
    %v2419 = vunpack.c.l.b16 %v2409
    %v2420 = vpack.c.b16 %v2417, %v2416
    %v2421 = vpack.c.b16 %v2419, %v2418
    %v2423 = vsel %vm491, %v2420, 0
    %v2426 = vsel %vm491, %v2421, 0
    %2428 = vmatprep.subr.bf16.mxu0 0
    %2429 = vmatpush1.bf16.msra.mxu0 %v2410
    %2430 = vmatprep.subr.bf16.mxu0 0
    %2431 = vmatpush1.bf16.msra.mxu0 %v2411
    %2432 = vmatprep.subr.bf16.mxu0 0
    %2433 = vmatpush1.bf16.msra.mxu0 0
    %2434 = vmatprep.subr.bf16.mxu0 0
    %2435 = vmatpush1.bf16.msra.mxu0 0
    %2436 = vmatprep.subr.bf16.mxu0 0
    %2437 = vmatpush1.bf16.msra.mxu0 0
    %2438 = vmatprep.subr.bf16.mxu0 0
    %2439 = vmatpush1.bf16.msra.mxu0 0
    %2440 = vmatprep.subr.bf16.mxu0 0
    %2441 = vmatpush1.bf16.msra.mxu0 0
    %2442 = vmatprep.subr.bf16.mxu0 0
    %2443 = vmatpush1.bf16.msra.mxu0 0
    %2444 = vmatprep.subr.bf16.mxu0 0
    %2445 = vmatpush1.bf16.msra.mxu0 0
    %2446 = vmatprep.subr.bf16.mxu0 0
    %2447 = vmatpush1.bf16.msra.mxu0 0
    %2448 = vmatprep.subr.bf16.mxu0 0
    %2449 = vmatpush1.bf16.msra.mxu0 0
    %2450 = vmatprep.subr.bf16.mxu0 0
    %2451 = vmatpush1.bf16.msra.mxu0 0
    %2452 = vmatprep.subr.bf16.mxu0 0
    %2453 = vmatpush1.bf16.msra.mxu0 0
    %2454 = vmatprep.subr.bf16.mxu0 0
    %2455 = vmatpush1.bf16.msra.mxu0 0
    %2456 = vmatprep.subr.bf16.mxu0 0
    %2457 = vmatpush1.bf16.msra.mxu0 0
    %2458 = vmatprep.subr.bf16.mxu0 0
    %2459 = vmatpush1.bf16.msra.mxu0 0
    %2460 = vmatprep.mubr.bf16.mxu0 0
    %2461 = vmatmul.mubr.bf16.gmra.mrb[0].mxu0 %v2423
    %v2462 = vpop.f32.mrb[0].mxu0
    %v2463 = vadd.f32 0.0, %v2462
    %v2464 = vpop.f32.mrb[0].mxu0
    %v2465 = vpop.f32.mrb[0].mxu0
    %v2466 = vadd.f32 0.0, %v2465
    %v2467 = vpop.f32.mrb[0].mxu0
    %2468 = vmatprep.mubr.bf16.mxu0 0
    %2469 = vmatmul.mubr.bf16.gmra.mrb[0].mxu0 %v2426
    %v2470 = vpop.f32.mrb[0].mxu0
    %v2471 = vadd.f32 0.0, %v2470
    %v2472 = vpop.f32.mrb[0].mxu0
    %v2473 = vpop.f32.mrb[0].mxu0
    %v2474 = vadd.f32 0.0, %v2473
    %v2475 = vpop.f32.mrb[0].mxu0
    %2476 = vdwg.mxu0
    %2477 = vadd.xlane.f32.xlu0 %v2463
    %v2478 = vpop.xlane.xlu0 %2477
    %2479 = vadd.xlane.f32.xlu0 %v2466
    %v2480 = vpop.xlane.xlu0 %2479
    %2481 = vadd.xlane.f32.xlu0 %v2471
    %v2482 = vpop.xlane.xlu0 %2481
    %2483 = vadd.xlane.f32.xlu0 %v2474
    %v2484 = vpop.xlane.xlu0 %2483
    %v2485 = vmul.f32 %v2463, %v2463
    %v2486 = vmul.f32 %v2466, %v2466
    %v2487 = vmul.f32 %v2471, %v2471
    %v2488 = vmul.f32 %v2474, %v2474
    %2489 = vadd.xlane.f32.xlu0 %v2485
    %v2490 = vpop.xlane.xlu0 %2489
    %2491 = vadd.xlane.f32.xlu0 %v2486
    %v2492 = vpop.xlane.xlu0 %2491
    %2493 = vadd.xlane.f32.xlu0 %v2487
    %v2494 = vpop.xlane.xlu0 %2493
    %2495 = vadd.xlane.f32.xlu0 %v2488
    %v2496 = vpop.xlane.xlu0 %2495
    %s2497 = scalar_lea.vmem [#allocation8], 96
    %v2498 = vld [vmem:[%s2497] sm:$0xff]
    %v2499 = vld [vmem:[%s2497 + $0x8] sm:$0xff]
    %v2500 = vld [vmem:[%s2497 + $0x10] sm:$0xff]
    %v2501 = vld [vmem:[%s2497 + $0x18] sm:$0xff]
    %v2503 = vsel %vm491, %v2498, 0
    %v2506 = vsel %vm491, %v2499, 0
    %v2509 = vsel %vm491, %v2500, 0
    %v2512 = vsel %vm491, %v2501, 0
    %2514 = vmatprep.subr.mxu0 0.0
    %2515 = vmatpush1.msra.mxu0 %v2478
    %2516 = vmatprep.subr.mxu0 0.0
    %2517 = vmatpush1.msra.mxu0 %v2480
    %2518 = vmatprep.subr.mxu0 0.0
    %2519 = vmatpush1.msra.mxu0 %v2482
    %2520 = vmatprep.subr.mxu0 0.0
    %2521 = vmatpush1.msra.mxu0 %v2484
    %2522 = vmatprep.subr.mxu0 0.0
    %2523 = vmatpush1.msra.mxu0 0.0
    %2524 = vmatprep.subr.mxu0 0.0
    %2525 = vmatpush1.msra.mxu0 0.0
    %2526 = vmatprep.subr.mxu0 0.0
    %2527 = vmatpush1.msra.mxu0 0.0
    %2528 = vmatprep.subr.mxu0 0.0
    %2529 = vmatpush1.msra.mxu0 0.0
    %2530 = vmatprep.subr.mxu0 0.0
    %2531 = vmatpush1.msra.mxu0 0.0
    %2532 = vmatprep.subr.mxu0 0.0
    %2533 = vmatpush1.msra.mxu0 0.0
    %2534 = vmatprep.subr.mxu0 0.0
    %2535 = vmatpush1.msra.mxu0 0.0
    %2536 = vmatprep.subr.mxu0 0.0
    %2537 = vmatpush1.msra.mxu0 0.0
    %2538 = vmatprep.subr.mxu0 0.0
    %2539 = vmatpush1.msra.mxu0 0.0
    %2540 = vmatprep.subr.mxu0 0.0
    %2541 = vmatpush1.msra.mxu0 0.0
    %2542 = vmatprep.subr.mxu0 0.0
    %2543 = vmatpush1.msra.mxu0 0.0
    %2544 = vmatprep.subr.mxu0 0.0
    %2545 = vmatpush1.msra.mxu0 0.0
    %2546 = vmatprep.subr.mxu0 0.0
    %2547 = vmatpush1.msra.mxu0 0.0
    %2548 = vmatprep.subr.mxu0 0.0
    %2549 = vmatpush1.msra.mxu0 0.0
    %2550 = vmatprep.subr.mxu0 0.0
    %2551 = vmatpush1.msra.mxu0 0.0
    %2552 = vmatprep.subr.mxu0 0.0
    %2553 = vmatpush1.msra.mxu0 0.0
    %2554 = vmatprep.subr.mxu0 0.0
    %2555 = vmatpush1.msra.mxu0 0.0
    %2556 = vmatprep.subr.mxu0 0.0
    %2557 = vmatpush1.msra.mxu0 0.0
    %2558 = vmatprep.subr.mxu0 0.0
    %2559 = vmatpush1.msra.mxu0 0.0
    %2560 = vmatprep.subr.mxu0 0.0
    %2561 = vmatpush1.msra.mxu0 0.0
    %2562 = vmatprep.subr.mxu0 0.0
    %2563 = vmatpush1.msra.mxu0 0.0
    %2564 = vmatprep.subr.mxu0 0.0
    %2565 = vmatpush1.msra.mxu0 0.0
    %2566 = vmatprep.subr.mxu0 0.0
    %2567 = vmatpush1.msra.mxu0 0.0
    %2568 = vmatprep.subr.mxu0 0.0
    %2569 = vmatpush1.msra.mxu0 0.0
    %2570 = vmatprep.subr.mxu0 0.0
    %2571 = vmatpush1.msra.mxu0 0.0
    %2572 = vmatprep.subr.mxu0 0.0
    %2573 = vmatpush1.msra.mxu0 0.0
    %2574 = vmatprep.subr.mxu0 0.0
    %2575 = vmatpush1.msra.mxu0 0.0
    %2576 = vmatprep.subr.mxu0 0.0
    %2577 = vmatpush1.msra.mxu0 0.0
    %2578 = vmatprep.mubr.f32.mxu0 0.0
    %2579 = vmatmul.mubr.f32.gmra.mrb[0].mxu0 %v2503
    %v2580 = vpop.f32.mrb[0].mxu0
    %v2581 = vadd.f32 0.0, %v2580
    %v2582 = vpop.f32.mrb[0].mxu0
    %2583 = vmatprep.mubr.f32.mxu0 0.0
    %2584 = vmatmul.mubr.f32.gmra.mrb[0].mxu0 %v2506
    %v2585 = vpop.f32.mrb[0].mxu0
    %v2586 = vadd.f32 0.0, %v2585
    %v2587 = vpop.f32.mrb[0].mxu0
    %2588 = vmatprep.mubr.f32.mxu0 0.0
    %2589 = vmatmul.mubr.f32.gmra.mrb[0].mxu0 %v2509
    %v2590 = vpop.f32.mrb[0].mxu0
    %v2591 = vadd.f32 0.0, %v2590
    %v2592 = vpop.f32.mrb[0].mxu0
    %2593 = vmatprep.mubr.f32.mxu0 0.0
    %2594 = vmatmul.mubr.f32.gmra.mrb[0].mxu0 %v2512
    %v2595 = vpop.f32.mrb[0].mxu0
    %v2596 = vadd.f32 0.0, %v2595
    %v2597 = vpop.f32.mrb[0].mxu0
    %2598 = vdwg.mxu0
    %2599 = vmatprep.subr.mxu0 0.0
    %2600 = vmatpush1.msra.mxu0 %v2490
    %2601 = vmatprep.subr.mxu0 0.0
    %2602 = vmatpush1.msra.mxu0 %v2492
    %2603 = vmatprep.subr.mxu0 0.0
    %2604 = vmatpush1.msra.mxu0 %v2494
    %2605 = vmatprep.subr.mxu0 0.0
    %2606 = vmatpush1.msra.mxu0 %v2496
    %2607 = vmatprep.subr.mxu0 0.0
    %2608 = vmatpush1.msra.mxu0 0.0
    %2609 = vmatprep.subr.mxu0 0.0
    %2610 = vmatpush1.msra.mxu0 0.0
    %2611 = vmatprep.subr.mxu0 0.0
    %2612 = vmatpush1.msra.mxu0 0.0
    %2613 = vmatprep.subr.mxu0 0.0
    %2614 = vmatpush1.msra.mxu0 0.0
    %2615 = vmatprep.subr.mxu0 0.0
    %2616 = vmatpush1.msra.mxu0 0.0
    %2617 = vmatprep.subr.mxu0 0.0
    %2618 = vmatpush1.msra.mxu0 0.0
    %2619 = vmatprep.subr.mxu0 0.0
    %2620 = vmatpush1.msra.mxu0 0.0
    %2621 = vmatprep.subr.mxu0 0.0
    %2622 = vmatpush1.msra.mxu0 0.0
    %2623 = vmatprep.subr.mxu0 0.0
    %2624 = vmatpush1.msra.mxu0 0.0
    %2625 = vmatprep.subr.mxu0 0.0
    %2626 = vmatpush1.msra.mxu0 0.0
    %2627 = vmatprep.subr.mxu0 0.0
    %2628 = vmatpush1.msra.mxu0 0.0
    %2629 = vmatprep.subr.mxu0 0.0
    %2630 = vmatpush1.msra.mxu0 0.0
    %2631 = vmatprep.subr.mxu0 0.0
    %2632 = vmatpush1.msra.mxu0 0.0
    %2633 = vmatprep.subr.mxu0 0.0
    %2634 = vmatpush1.msra.mxu0 0.0
    %2635 = vmatprep.subr.mxu0 0.0
    %2636 = vmatpush1.msra.mxu0 0.0
    %2637 = vmatprep.subr.mxu0 0.0
    %2638 = vmatpush1.msra.mxu0 0.0
    %2639 = vmatprep.subr.mxu0 0.0
    %2640 = vmatpush1.msra.mxu0 0.0
    %2641 = vmatprep.subr.mxu0 0.0
    %2642 = vmatpush1.msra.mxu0 0.0
    %2643 = vmatprep.subr.mxu0 0.0
    %2644 = vmatpush1.msra.mxu0 0.0
    %2645 = vmatprep.subr.mxu0 0.0
    %2646 = vmatpush1.msra.mxu0 0.0
    %2647 = vmatprep.subr.mxu0 0.0
    %2648 = vmatpush1.msra.mxu0 0.0
    %2649 = vmatprep.subr.mxu0 0.0
    %2650 = vmatpush1.msra.mxu0 0.0
    %2651 = vmatprep.subr.mxu0 0.0
    %2652 = vmatpush1.msra.mxu0 0.0
    %2653 = vmatprep.subr.mxu0 0.0
    %2654 = vmatpush1.msra.mxu0 0.0
    %2655 = vmatprep.subr.mxu0 0.0
    %2656 = vmatpush1.msra.mxu0 0.0
    %2657 = vmatprep.subr.mxu0 0.0
    %2658 = vmatpush1.msra.mxu0 0.0
    %2659 = vmatprep.subr.mxu0 0.0
    %2660 = vmatpush1.msra.mxu0 0.0
    %2661 = vmatprep.subr.mxu0 0.0
    %2662 = vmatpush1.msra.mxu0 0.0
    %2663 = vmatprep.mubr.f32.mxu0 0.0
    %2664 = vmatmul.mubr.f32.gmra.mrb[0].mxu0 %v2503
    %v2665 = vpop.f32.mrb[0].mxu0
    %v2666 = vadd.f32 0.0, %v2665
    %v2667 = vpop.f32.mrb[0].mxu0
    %2668 = vmatprep.mubr.f32.mxu0 0.0
    %2669 = vmatmul.mubr.f32.gmra.mrb[0].mxu0 %v2506
    %v2670 = vpop.f32.mrb[0].mxu0
    %v2671 = vadd.f32 0.0, %v2670
    %v2672 = vpop.f32.mrb[0].mxu0
    %2673 = vmatprep.mubr.f32.mxu0 0.0
    %2674 = vmatmul.mubr.f32.gmra.mrb[0].mxu0 %v2509
    %v2675 = vpop.f32.mrb[0].mxu0
    %v2676 = vadd.f32 0.0, %v2675
    %v2677 = vpop.f32.mrb[0].mxu0
    %2678 = vmatprep.mubr.f32.mxu0 0.0
    %2679 = vmatmul.mubr.f32.gmra.mrb[0].mxu0 %v2512
    %v2680 = vpop.f32.mrb[0].mxu0
    %v2681 = vadd.f32 0.0, %v2680
    %v2682 = vpop.f32.mrb[0].mxu0
    %2683 = vdwg.mxu0
    %v2684 = vmul.f32 %v2581, %v2581
    %v2685 = vmul.f32 %v2586, %v2586
    %v2686 = vmul.f32 %v2591, %v2591
    %v2687 = vmul.f32 %v2596, %v2596
    %v2688 = vsub.f32 %v2666, %v2684
    %v2689 = vsub.f32 %v2671, %v2685
    %v2690 = vsub.f32 %v2676, %v2686
    %v2691 = vsub.f32 %v2681, %v2687
    %v2692 = vmax.f32 %v2688, 0.0
    %v2693 = vmax.f32 %v2689, 0.0
    %v2694 = vmax.f32 %v2690, 0.0
    %v2695 = vmax.f32 %v2691, 0.0
    %v2696 = vadd.f32 %v2692, 1e-05
    %v2697 = vadd.f32 %v2693, 1e-05
    %v2698 = vadd.f32 %v2694, 1e-05
    %v2699 = vadd.f32 %v2695, 1e-05
    %v2700 = vrsqrt.pop %v2696
    %v2701 = vrsqrt.pop %v2697
    %v2702 = vrsqrt.pop %v2698
    %v2703 = vrsqrt.pop %v2699
    %2704 = vrot.lane.b32.xlu0 %v2498, 96
    %v2705 = vpop.permute.xlu0 %2704
    %2706 = vrot.lane.b32.xlu0 %v2499, 96
    %v2707 = vpop.permute.xlu0 %2706
    %2708 = vrot.lane.b32.xlu0 %v2500, 96
    %v2709 = vpop.permute.xlu0 %2708
    %2710 = vrot.lane.b32.xlu0 %v2501, 96
    %v2711 = vpop.permute.xlu0 %2710
    %v2716 = vmul.f32 %v2700, %v2705
    %v2717 = vmul.f32 %v2701, %v2707
    %v2718 = vmul.f32 %v2702, %v2709
    %v2719 = vmul.f32 %v2703, %v2711
    %v2720 = vmul.f32 %v2581, %v2716
    %v2721 = vmul.f32 %v2586, %v2717
    %v2722 = vmul.f32 %v2591, %v2718
    %v2723 = vmul.f32 %v2596, %v2719
    %2728 = vrot.lane.b32.xlu0 %v2720, 33
    %v2729 = vpop.permute.xlu0 %2728
    %2730 = vrot.lane.b32.xlu0 %v2721, 33
    %v2731 = vpop.permute.xlu0 %2730
    %2732 = vrot.lane.b32.xlu0 %v2722, 33
    %v2733 = vpop.permute.xlu0 %2732
    %2734 = vrot.lane.b32.xlu0 %v2723, 33
    %v2735 = vpop.permute.xlu0 %2734
    %v2740 = vsub.f32 %v2498, %v2729
    %v2741 = vsub.f32 %v2499, %v2731
    %v2742 = vsub.f32 %v2500, %v2733
    %v2743 = vsub.f32 %v2501, %v2735
    %2745 = vset.pattern.permute.xlu0 0
    %2746 = vperm.xlu0 %2745, %v2716
    %v2747 = vpop.permute.xlu0 %2746
    %2750 = vset.pattern.permute.xlu0 0
    %2751 = vperm.xlu0 %2750, %v2717
    %v2752 = vpop.permute.xlu0 %2751
    %2755 = vset.pattern.permute.xlu0 0
    %2756 = vperm.xlu0 %2755, %v2718
    %v2757 = vpop.permute.xlu0 %2756
    %2760 = vset.pattern.permute.xlu0 0
    %2761 = vperm.xlu0 %2760, %v2719
    %v2762 = vpop.permute.xlu0 %2761
    %v2764 = vmul.f32 %v2463, %v2747
    %v2765 = vmul.f32 %v2466, %v2752
    %v2766 = vmul.f32 %v2471, %v2757
    %v2767 = vmul.f32 %v2474, %v2762
    %2769 = vset.pattern.permute.xlu0 33
    %2770 = vperm.xlu0 %2769, %v2740
    %v2771 = vpop.permute.xlu0 %2770
    %2774 = vset.pattern.permute.xlu0 33
    %2775 = vperm.xlu0 %2774, %v2741
    %v2776 = vpop.permute.xlu0 %2775
    %2779 = vset.pattern.permute.xlu0 33
    %2780 = vperm.xlu0 %2779, %v2742
    %v2781 = vpop.permute.xlu0 %2780
    %2784 = vset.pattern.permute.xlu0 33
    %2785 = vperm.xlu0 %2784, %v2743
    %v2786 = vpop.permute.xlu0 %2785
    %v2788 = vadd.f32 %v2764, %v2771
    %v2789 = vadd.f32 %v2765, %v2776
    %v2790 = vadd.f32 %v2766, %v2781
    %v2791 = vadd.f32 %v2767, %v2786
    %vm2792 = vcmp.gt.f32.partialorder %v2788, 0.0
    %vm2793 = vcmp.gt.f32.partialorder %v2789, 0.0
    %vm2794 = vcmp.gt.f32.partialorder %v2790, 0.0
    %vm2795 = vcmp.gt.f32.partialorder %v2791, 0.0
    %v2796 = vmul.f32 %v2788, 0.2
    %v2797 = vmul.f32 %v2789, 0.2
    %v2798 = vmul.f32 %v2790, 0.2
    %v2799 = vmul.f32 %v2791, 0.2
    %v2800 = vsel %vm2792, %v2788, %v2796
    %v2801 = vsel %vm2793, %v2789, %v2797
    %v2802 = vsel %vm2794, %v2790, %v2798
    %v2803 = vsel %vm2795, %v2791, %v2799
    %2804 = vst [vmem:[#allocation10] sm:$0xff] %v2800
    %2805 = vst [vmem:[#allocation10 + $0x8] sm:$0xff] %v2801
    %2806 = vst [vmem:[#allocation10 + $0x10] sm:$0xff] %v2802
    %2807 = vst [vmem:[#allocation10 + $0x18] sm:$0xff] %v2803
    // Predicated region
    $region34: #{tpu_custom_call.1} parent=1 // pred_check
      _
    $region35: #{tpu_custom_call.1} parent=1 // pred_check_branch
      %2809 = sbr.rel (0) target = $region37
    $region36: #{tpu_custom_call.1} parent=1 // pred_region
      %s2811 = ssub.s32 512, 512
      %2812 = vsyncadd [#allocation4], %s2811
      %s2813 = sshll.u32 [#allocation10], 4
      %s2814 = int_to_ptr.vmem [resolvable:$true] %s2813
      %2819 = dma.vmem_to_hbm [thread:$0]  %s2814, 512, %s4, [#allocation4], 128, 128, 8
    $region37: #{tpu_custom_call.1} parent=1 // pred_fallthru
      _
    // Predicated region
    $region38: #{tpu_custom_call.1} parent=1 // pred_check
      _
    $region39: #{tpu_custom_call.1} parent=1 // pred_check_branch
      %2821 = sbr.rel (0) target = $region41
    $region40: #{tpu_custom_call.1} parent=1 // pred_region
      %2822 = dma.done [#allocation4], 512
    $region41: #{tpu_custom_call.1} parent=1 // pred_fallthru
      _
    %2823 = vsyncpa [#allocation3], 1
    %2824 = vsyncpa [#allocation6], 1
    %2825 = vsyncpa [#allocation9], 1
    %2826 = vsyncpa [#allocation4], 1

</llo_original>
